<compile_context>
chip_gen: v6e
topology: v6e:2x2x1
jax: 0.10.0
libtpu: 0.0.40
codegen_flags: <defaults>
</compile_context>

<pallas_src>
import jax
import jax.numpy as jnp
from jax.experimental import pallas as pl
from jax.experimental.pallas import tpu as pltpu

# ---------------------------------------------------------------------------
# Model dimensions (real sizes; channel dims are zero-padded to C_PAD lanes).
# ---------------------------------------------------------------------------
CIN, STEM_C, BLOCK_C, FEAT_DIM, EMB_DIM = 3, 16, 32, 64, 128
C_PAD = 128                    # lane-dense channel width
K_STEM = 9 * CIN               # 27 (im2col contraction)
K_STEM_PAD = 32                # padded, sublane-aligned contraction dim
H_IN = W_IN = 32
HO = WO = H_IN // 2            # stem is stride 2 -> 16 x 16 feature map


def _hardswish(x):
    return x * jnp.clip(x + 3.0, 0.0, 6.0) * (1.0 / 6.0)


# ---------------------------------------------------------------------------
# Fused forward kernel: one grid step == one image.
# ---------------------------------------------------------------------------
def _reidnet_kernel(patches_ref, w_stem_ref, b_stem_ref, w_dw_ref,
                    w_pw_ref, b_pw_ref, w_head_ref, b_head_ref,
                    w_emb_ref, b_emb_ref, out_ref, dw_pad_ref):
    # ---- stem conv as im2col matmul: (256, 32)bf16 @ (32, 128)bf16 --------
    y = jnp.dot(patches_ref[0], w_stem_ref[...],
                preferred_element_type=jnp.float32)
    y = _hardswish(y + b_stem_ref[...])                    # (256, 128) f32

    # ---- depthwise 3x3 (pad 1) + ReLU via zero-padded VMEM scratch --------
    dw_pad_ref[...] = jnp.zeros_like(dw_pad_ref)
    dw_pad_ref[1:HO + 1, 1:WO + 1, :] = y.reshape(HO, WO, C_PAD)
    wt = w_dw_ref[...]                                     # (16, 128) f32
    acc = jnp.zeros((HO, WO, C_PAD), jnp.float32)
    for kw in range(3):
        xw = dw_pad_ref[:, kw:kw + WO, :]                  # (18, 16, 128)
        for kh in range(3):
            tap = xw[kh:kh + HO, :, :]                     # free outer slice
            idx = 3 * kh + kw
            acc = acc + tap * wt[idx:idx + 1, :].reshape(1, 1, C_PAD)
    z = jnp.maximum(acc, 0.0)                              # ReLU

    # ---- pointwise 1x1 conv: (256, 128) @ (128, 128) ----------------------
    p = jnp.dot(z.reshape(HO * WO, C_PAD).astype(jnp.bfloat16),
                w_pw_ref[...], preferred_element_type=jnp.float32)
    p = _hardswish(p + b_pw_ref[...])                      # (256, 128) f32

    # ---- global average pool over spatial ---------------------------------
    feats = jnp.mean(p, axis=0, keepdims=True)             # (1, 128)

    # ---- head Linear + hardswish ------------------------------------------
    h = jnp.dot(feats.astype(jnp.bfloat16), w_head_ref[...],
                preferred_element_type=jnp.float32)
    h = _hardswish(h + b_head_ref[...])

    # dropout_rate == 0.0 -> self.dropout is None in the reference: identity.

    # ---- embedding Linear (exact equivalent of nn.Linear) ------------------
    e = jnp.dot(h.astype(jnp.bfloat16), w_emb_ref[...],
                preferred_element_type=jnp.float32)
    out_ref[...] = (e + b_emb_ref[...]).reshape(1, 1, C_PAD).astype(out_ref.dtype)


def _resident_spec(shape):
    """Weight/bias spec: constant block index -> stays resident in VMEM."""
    ndim = len(shape)
    return pl.BlockSpec(shape, lambda i: (0,) * ndim)


def _fused_forward(patches, pw):
    n = patches.shape[0]
    out = pl.pallas_call(
        _reidnet_kernel,
        out_shape=jax.ShapeDtypeStruct((n, 1, C_PAD), jnp.float32),
        grid=(n,),
        in_specs=[
            pl.BlockSpec((1, HO * WO, K_STEM_PAD), lambda i: (i, 0, 0)),
            _resident_spec((K_STEM_PAD, C_PAD)),   # w_stem (bf16)
            _resident_spec((1, C_PAD)),            # b_stem
            _resident_spec((16, C_PAD)),           # w_dw (9 real taps)
            _resident_spec((C_PAD, C_PAD)),        # w_pw (bf16)
            _resident_spec((1, C_PAD)),            # b_pw
            _resident_spec((C_PAD, C_PAD)),        # w_head (bf16)
            _resident_spec((1, C_PAD)),            # b_head
            _resident_spec((C_PAD, C_PAD)),        # w_emb (bf16)
            _resident_spec((1, C_PAD)),            # b_emb
        ],
        out_specs=pl.BlockSpec((1, 1, C_PAD), lambda i: (i, 0, 0)),
        scratch_shapes=[pltpu.VMEM((HO + 2, WO + 2, C_PAD), jnp.float32)],
        compiler_params=pltpu.CompilerParams(
            dimension_semantics=("parallel",)),
    )(patches, pw["w_stem"], pw["b_stem"], pw["w_dw"], pw["w_pw"], pw["b_pw"],
      pw["w_head"], pw["b_head"], pw["w_emb"], pw["b_emb"])
    return out.reshape(n, C_PAD)


# ---------------------------------------------------------------------------
# Parameters (deterministic, in-script) + lane-dense padding
# ---------------------------------------------------------------------------
def init_params(key):
    ks = jax.random.split(key, 10)
    f32 = jnp.float32
    return {
        "w_stem": jax.random.normal(ks[0], (K_STEM, STEM_C), f32) * 0.1,
        "b_stem": jax.random.normal(ks[1], (STEM_C,), f32) * 0.01,
        "w_dw":   jax.random.normal(ks[2], (9, STEM_C), f32) * 0.1,
        "w_pw":   jax.random.normal(ks[3], (STEM_C, BLOCK_C), f32) * 0.1,
        "b_pw":   jax.random.normal(ks[4], (BLOCK_C,), f32) * 0.01,
        "w_head": jax.random.normal(ks[5], (BLOCK_C, FEAT_DIM), f32) * 0.1,
        "b_head": jax.random.normal(ks[6], (FEAT_DIM,), f32) * 0.01,
        "w_emb":  jax.random.normal(ks[7], (FEAT_DIM, EMB_DIM), f32) * 0.05,
        "b_emb":  jax.random.normal(ks[8], (EMB_DIM,), f32) * 0.01,
    }


def _pad2(w, rows, cols, dtype):
    r, c = w.shape
    return jnp.pad(w, ((0, rows - r), (0, cols - c))).astype(dtype)


def _pad_bias(b, cols):
    return jnp.pad(b, (0, cols - b.shape[0])).reshape(1, cols).astype(jnp.float32)


def pad_params(params):
    """Zero-pad all weights to lane-dense width 128; MXU operands -> bf16."""
    return {
        "w_stem": _pad2(params["w_stem"], K_STEM_PAD, C_PAD, jnp.bfloat16),
        "b_stem": _pad_bias(params["b_stem"], C_PAD),
        "w_dw":   _pad2(params["w_dw"], 16, C_PAD, jnp.float32),
        "w_pw":   _pad2(params["w_pw"], C_PAD, C_PAD, jnp.bfloat16),
        "b_pw":   _pad_bias(params["b_pw"], C_PAD),
        "w_head": _pad2(params["w_head"], C_PAD, C_PAD, jnp.bfloat16),
        "b_head": _pad_bias(params["b_head"], C_PAD),
        "w_emb":  _pad2(params["w_emb"], C_PAD, C_PAD, jnp.bfloat16),
        "b_emb":  _pad_bias(params["b_emb"], C_PAD),
    }


def _im2col_3x3_s2(x_nhwc):
    """3x3 / stride-2 / pad-1 patch extraction -> (N, Ho*Wo, K_STEM_PAD) bf16."""
    n, h, w, c = x_nhwc.shape
    ho, wo = h // 2, w // 2
    xp = jnp.pad(x_nhwc, ((0, 0), (1, 1), (1, 1), (0, 0)))
    taps = [xp[:, kh:kh + 2 * ho:2, kw:kw + 2 * wo:2, :]
            for kh in range(3) for kw in range(3)]
    patches = jnp.concatenate(taps, axis=-1).reshape(n, ho * wo, 9 * c)
    patches = jnp.pad(patches, ((0, 0), (0, 0), (0, K_STEM_PAD - 9 * c)))
    return patches.astype(jnp.bfloat16)


# ---------------------------------------------------------------------------
# Forward pass (mirrors ReIDNet.forward: backbone -> [dropout] -> embedding)
# ---------------------------------------------------------------------------
@jax.jit
def reidnet_forward(params, x_nchw):
    x = jnp.transpose(x_nchw, (0, 2, 3, 1))        # NCHW -> NHWC
    patches = _im2col_3x3_s2(x)                    # (N, 256, 32) bf16
    pw = pad_params(params)                        # lane-dense, bf16 MXU weights
    return _fused_forward(patches, pw)             # (N, EMB_DIM) f32


if __name__ == "__main__":
    root = jax.random.PRNGKey(0)
    k_params, k_x = jax.random.split(root)
    params = init_params(k_params)

    x = jax.random.normal(k_x, (2, CIN, H_IN, W_IN), jnp.float32)   # NCHW input

    out = reidnet_forward(params, x)
    out = jax.block_until_ready(out)
    assert out.shape == (2, EMB_DIM) and out.dtype == jnp.float32
    assert bool(jnp.all(jnp.isfinite(out)))
    print("KERNEL_OK")
</pallas_src>

<mosaic_0001>
module attributes {stable_mosaic.version = 11 : i64} {
  func.func @_reidnet_kernel(%arg0: i32, %arg1: memref<1x256x32xbf16, #tpu.memory_space<vmem>>, %arg2: memref<32x128xbf16, #tpu.memory_space<vmem>>, %arg3: memref<1x128xf32, #tpu.memory_space<vmem>>, %arg4: memref<16x128xf32, #tpu.memory_space<vmem>>, %arg5: memref<128x128xbf16, #tpu.memory_space<vmem>>, %arg6: memref<1x128xf32, #tpu.memory_space<vmem>>, %arg7: memref<128x128xbf16, #tpu.memory_space<vmem>>, %arg8: memref<1x128xf32, #tpu.memory_space<vmem>>, %arg9: memref<128x128xbf16, #tpu.memory_space<vmem>>, %arg10: memref<1x128xf32, #tpu.memory_space<vmem>>, %arg11: memref<1x1x128xf32, #tpu.memory_space<vmem>>, %arg12: memref<18x18x128xf32, #tpu.memory_space<vmem>>) attributes {dimension_semantics = [#tpu.dimension_semantics<parallel>], iteration_bounds = array<i64: 2>, scalar_prefetch = 0 : i64, scratch_operands = 1 : i64, tpu.core_type = #tpu.core_type<tc>, window_params = [{transform_indices = @transform_0, window_bounds = array<i64: 1, 256, 32>}, {pipeline_mode = #tpu.pipeline_mode<synchronous>, transform_indices = @transform_1, window_bounds = array<i64: 32, 128>}, {pipeline_mode = #tpu.pipeline_mode<synchronous>, transform_indices = @transform_2, window_bounds = array<i64: 1, 128>}, {pipeline_mode = #tpu.pipeline_mode<synchronous>, transform_indices = @transform_3, window_bounds = array<i64: 16, 128>}, {pipeline_mode = #tpu.pipeline_mode<synchronous>, transform_indices = @transform_4, window_bounds = array<i64: 128, 128>}, {pipeline_mode = #tpu.pipeline_mode<synchronous>, transform_indices = @transform_5, window_bounds = array<i64: 1, 128>}, {pipeline_mode = #tpu.pipeline_mode<synchronous>, transform_indices = @transform_6, window_bounds = array<i64: 128, 128>}, {pipeline_mode = #tpu.pipeline_mode<synchronous>, transform_indices = @transform_7, window_bounds = array<i64: 1, 128>}, {pipeline_mode = #tpu.pipeline_mode<synchronous>, transform_indices = @transform_8, window_bounds = array<i64: 128, 128>}, {pipeline_mode = #tpu.pipeline_mode<synchronous>, transform_indices = @transform_9, window_bounds = array<i64: 1, 128>}, {transform_indices = @transform_10, window_bounds = array<i64: 1, 1, 128>}]} {
    %c0 = arith.constant 0 : index
    %c0_0 = arith.constant 0 : index
    %c0_1 = arith.constant 0 : index
    %0 = vector.load %arg1[%c0, %c0_0, %c0_1] : memref<1x256x32xbf16, #tpu.memory_space<vmem>>, vector<1x256x32xbf16>
    %1 = vector.shape_cast %0 : vector<1x256x32xbf16> to vector<256x32xbf16>
    %c0_2 = arith.constant 0 : index
    %c0_3 = arith.constant 0 : index
    %2 = vector.load %arg2[%c0_2, %c0_3] : memref<32x128xbf16, #tpu.memory_space<vmem>>, vector<32x128xbf16>
    %cst = arith.constant dense<0.000000e+00> : vector<256x128xf32>
    %3 = tpu.matmul %1, %2, %cst {dimension_numbers = #tpu.dot_dimension_numbers<[1], [0], [0], [1], [0, 0, 1, 1], [], []>} : vector<256x32xbf16>, vector<32x128xbf16>, vector<256x128xf32> -> vector<256x128xf32>
    %c0_4 = arith.constant 0 : index
    %c0_5 = arith.constant 0 : index
    %4 = vector.load %arg3[%c0_4, %c0_5] : memref<1x128xf32, #tpu.memory_space<vmem>>, vector<1x128xf32>
    %5 = vector.broadcast %4 : vector<1x128xf32> to vector<256x128xf32>
    %6 = arith.addf %3, %5 : vector<256x128xf32>
    %cst_6 = arith.constant 3.000000e+00 : f32
    %7 = vector.broadcast %cst_6 : f32 to vector<256x128xf32>
    %8 = arith.addf %6, %7 : vector<256x128xf32>
    %cst_7 = arith.constant 0.000000e+00 : f32
    %cst_8 = arith.constant 6.000000e+00 : f32
    %9 = vector.broadcast %cst_7 : f32 to vector<256x128xf32>
    %10 = arith.maximumf %9, %8 : vector<256x128xf32>
    %11 = vector.broadcast %cst_8 : f32 to vector<256x128xf32>
    %12 = arith.minimumf %11, %10 : vector<256x128xf32>
    %13 = arith.mulf %6, %12 : vector<256x128xf32>
    %cst_9 = arith.constant 0.166666672 : f32
    %14 = vector.broadcast %cst_9 : f32 to vector<256x128xf32>
    %15 = arith.mulf %13, %14 : vector<256x128xf32>
    %cst_10 = arith.constant 0.000000e+00 : f32
    %16 = vector.broadcast %cst_10 : f32 to vector<18x18x128xf32>
    %c0_11 = arith.constant 0 : index
    %c0_12 = arith.constant 0 : index
    %c0_13 = arith.constant 0 : index
    %17 = vector.load %arg12[%c0_11, %c0_12, %c0_13] : memref<18x18x128xf32, #tpu.memory_space<vmem>>, vector<18x18x128xf32>
    tpu.vector_store %arg12[%c0_11, %c0_12, %c0_13], %16 {strides = array<i32>} : memref<18x18x128xf32, #tpu.memory_space<vmem>>, vector<18x18x128xf32>,
    %18 = vector.shape_cast %15 : vector<256x128xf32> to vector<16x16x128xf32>
    %c1 = arith.constant 1 : index
    %c1_14 = arith.constant 1 : index
    %c0_15 = arith.constant 0 : index
    %19 = vector.load %arg12[%c1, %c1_14, %c0_15] : memref<18x18x128xf32, #tpu.memory_space<vmem>>, vector<16x16x128xf32>
    tpu.vector_store %arg12[%c1, %c1_14, %c0_15], %18 {strides = array<i32>} : memref<18x18x128xf32, #tpu.memory_space<vmem>>, vector<16x16x128xf32>,
    %c0_16 = arith.constant 0 : index
    %c0_17 = arith.constant 0 : index
    %20 = vector.load %arg4[%c0_16, %c0_17] : memref<16x128xf32, #tpu.memory_space<vmem>>, vector<16x128xf32>
    %cst_18 = arith.constant 0.000000e+00 : f32
    %21 = vector.broadcast %cst_18 : f32 to vector<16x16x128xf32>
    %c0_19 = arith.constant 0 : index
    %c0_20 = arith.constant 0 : index
    %c0_21 = arith.constant 0 : index
    %22 = vector.load %arg12[%c0_19, %c0_20, %c0_21] : memref<18x18x128xf32, #tpu.memory_space<vmem>>, vector<18x16x128xf32>
    %23 = vector.extract_strided_slice %22 {offsets = [0, 0, 0], sizes = [16, 16, 128], strides = [1, 1, 1]} : vector<18x16x128xf32> to vector<16x16x128xf32>
    %24 = vector.extract_strided_slice %20 {offsets = [0, 0], sizes = [1, 128], strides = [1, 1]} : vector<16x128xf32> to vector<1x128xf32>
    %25 = vector.shape_cast %24 : vector<1x128xf32> to vector<1x1x128xf32>
    %26 = vector.broadcast %25 : vector<1x1x128xf32> to vector<16x16x128xf32>
    %27 = arith.mulf %23, %26 : vector<16x16x128xf32>
    %28 = arith.addf %21, %27 : vector<16x16x128xf32>
    %29 = vector.extract_strided_slice %22 {offsets = [1, 0, 0], sizes = [16, 16, 128], strides = [1, 1, 1]} : vector<18x16x128xf32> to vector<16x16x128xf32>
    %30 = vector.extract_strided_slice %20 {offsets = [3, 0], sizes = [1, 128], strides = [1, 1]} : vector<16x128xf32> to vector<1x128xf32>
    %31 = vector.shape_cast %30 : vector<1x128xf32> to vector<1x1x128xf32>
    %32 = vector.broadcast %31 : vector<1x1x128xf32> to vector<16x16x128xf32>
    %33 = arith.mulf %29, %32 : vector<16x16x128xf32>
    %34 = arith.addf %28, %33 : vector<16x16x128xf32>
    %35 = vector.extract_strided_slice %22 {offsets = [2, 0, 0], sizes = [16, 16, 128], strides = [1, 1, 1]} : vector<18x16x128xf32> to vector<16x16x128xf32>
    %36 = vector.extract_strided_slice %20 {offsets = [6, 0], sizes = [1, 128], strides = [1, 1]} : vector<16x128xf32> to vector<1x128xf32>
    %37 = vector.shape_cast %36 : vector<1x128xf32> to vector<1x1x128xf32>
    %38 = vector.broadcast %37 : vector<1x1x128xf32> to vector<16x16x128xf32>
    %39 = arith.mulf %35, %38 : vector<16x16x128xf32>
    %40 = arith.addf %34, %39 : vector<16x16x128xf32>
    %c0_22 = arith.constant 0 : index
    %c1_23 = arith.constant 1 : index
    %c0_24 = arith.constant 0 : index
    %41 = vector.load %arg12[%c0_22, %c1_23, %c0_24] : memref<18x18x128xf32, #tpu.memory_space<vmem>>, vector<18x16x128xf32>
    %42 = vector.extract_strided_slice %41 {offsets = [0, 0, 0], sizes = [16, 16, 128], strides = [1, 1, 1]} : vector<18x16x128xf32> to vector<16x16x128xf32>
    %43 = vector.extract_strided_slice %20 {offsets = [1, 0], sizes = [1, 128], strides = [1, 1]} : vector<16x128xf32> to vector<1x128xf32>
    %44 = vector.shape_cast %43 : vector<1x128xf32> to vector<1x1x128xf32>
    %45 = vector.broadcast %44 : vector<1x1x128xf32> to vector<16x16x128xf32>
    %46 = arith.mulf %42, %45 : vector<16x16x128xf32>
    %47 = arith.addf %40, %46 : vector<16x16x128xf32>
    %48 = vector.extract_strided_slice %41 {offsets = [1, 0, 0], sizes = [16, 16, 128], strides = [1, 1, 1]} : vector<18x16x128xf32> to vector<16x16x128xf32>
    %49 = vector.extract_strided_slice %20 {offsets = [4, 0], sizes = [1, 128], strides = [1, 1]} : vector<16x128xf32> to vector<1x128xf32>
    %50 = vector.shape_cast %49 : vector<1x128xf32> to vector<1x1x128xf32>
    %51 = vector.broadcast %50 : vector<1x1x128xf32> to vector<16x16x128xf32>
    %52 = arith.mulf %48, %51 : vector<16x16x128xf32>
    %53 = arith.addf %47, %52 : vector<16x16x128xf32>
    %54 = vector.extract_strided_slice %41 {offsets = [2, 0, 0], sizes = [16, 16, 128], strides = [1, 1, 1]} : vector<18x16x128xf32> to vector<16x16x128xf32>
    %55 = vector.extract_strided_slice %20 {offsets = [7, 0], sizes = [1, 128], strides = [1, 1]} : vector<16x128xf32> to vector<1x128xf32>
    %56 = vector.shape_cast %55 : vector<1x128xf32> to vector<1x1x128xf32>
    %57 = vector.broadcast %56 : vector<1x1x128xf32> to vector<16x16x128xf32>
    %58 = arith.mulf %54, %57 : vector<16x16x128xf32>
    %59 = arith.addf %53, %58 : vector<16x16x128xf32>
    %c0_25 = arith.constant 0 : index
    %c2 = arith.constant 2 : index
    %c0_26 = arith.constant 0 : index
    %60 = vector.load %arg12[%c0_25, %c2, %c0_26] : memref<18x18x128xf32, #tpu.memory_space<vmem>>, vector<18x16x128xf32>
    %61 = vector.extract_strided_slice %60 {offsets = [0, 0, 0], sizes = [16, 16, 128], strides = [1, 1, 1]} : vector<18x16x128xf32> to vector<16x16x128xf32>
    %62 = vector.extract_strided_slice %20 {offsets = [2, 0], sizes = [1, 128], strides = [1, 1]} : vector<16x128xf32> to vector<1x128xf32>
    %63 = vector.shape_cast %62 : vector<1x128xf32> to vector<1x1x128xf32>
    %64 = vector.broadcast %63 : vector<1x1x128xf32> to vector<16x16x128xf32>
    %65 = arith.mulf %61, %64 : vector<16x16x128xf32>
    %66 = arith.addf %59, %65 : vector<16x16x128xf32>
    %67 = vector.extract_strided_slice %60 {offsets = [1, 0, 0], sizes = [16, 16, 128], strides = [1, 1, 1]} : vector<18x16x128xf32> to vector<16x16x128xf32>
    %68 = vector.extract_strided_slice %20 {offsets = [5, 0], sizes = [1, 128], strides = [1, 1]} : vector<16x128xf32> to vector<1x128xf32>
    %69 = vector.shape_cast %68 : vector<1x128xf32> to vector<1x1x128xf32>
    %70 = vector.broadcast %69 : vector<1x1x128xf32> to vector<16x16x128xf32>
    %71 = arith.mulf %67, %70 : vector<16x16x128xf32>
    %72 = arith.addf %66, %71 : vector<16x16x128xf32>
    %73 = vector.extract_strided_slice %60 {offsets = [2, 0, 0], sizes = [16, 16, 128], strides = [1, 1, 1]} : vector<18x16x128xf32> to vector<16x16x128xf32>
    %74 = vector.extract_strided_slice %20 {offsets = [8, 0], sizes = [1, 128], strides = [1, 1]} : vector<16x128xf32> to vector<1x128xf32>
    %75 = vector.shape_cast %74 : vector<1x128xf32> to vector<1x1x128xf32>
    %76 = vector.broadcast %75 : vector<1x1x128xf32> to vector<16x16x128xf32>
    %77 = arith.mulf %73, %76 : vector<16x16x128xf32>
    %78 = arith.addf %72, %77 : vector<16x16x128xf32>
    %cst_27 = arith.constant 0.000000e+00 : f32
    %79 = vector.broadcast %cst_27 : f32 to vector<16x16x128xf32>
    %80 = arith.maximumf %78, %79 : vector<16x16x128xf32>
    %81 = vector.shape_cast %80 : vector<16x16x128xf32> to vector<256x128xf32>
    %82 = arith.truncf %81 : vector<256x128xf32> to vector<256x128xbf16>
    %c0_28 = arith.constant 0 : index
    %c0_29 = arith.constant 0 : index
    %83 = vector.load %arg5[%c0_28, %c0_29] : memref<128x128xbf16, #tpu.memory_space<vmem>>, vector<128x128xbf16>
    %cst_30 = arith.constant dense<0.000000e+00> : vector<256x128xf32>
    %84 = tpu.matmul %82, %83, %cst_30 {dimension_numbers = #tpu.dot_dimension_numbers<[1], [0], [0], [1], [0, 0, 1, 1], [], []>} : vector<256x128xbf16>, vector<128x128xbf16>, vector<256x128xf32> -> vector<256x128xf32>
    %c0_31 = arith.constant 0 : index
    %c0_32 = arith.constant 0 : index
    %85 = vector.load %arg6[%c0_31, %c0_32] : memref<1x128xf32, #tpu.memory_space<vmem>>, vector<1x128xf32>
    %86 = vector.broadcast %85 : vector<1x128xf32> to vector<256x128xf32>
    %87 = arith.addf %84, %86 : vector<256x128xf32>
    %cst_33 = arith.constant 3.000000e+00 : f32
    %88 = vector.broadcast %cst_33 : f32 to vector<256x128xf32>
    %89 = arith.addf %87, %88 : vector<256x128xf32>
    %cst_34 = arith.constant 0.000000e+00 : f32
    %cst_35 = arith.constant 6.000000e+00 : f32
    %90 = vector.broadcast %cst_34 : f32 to vector<256x128xf32>
    %91 = arith.maximumf %90, %89 : vector<256x128xf32>
    %92 = vector.broadcast %cst_35 : f32 to vector<256x128xf32>
    %93 = arith.minimumf %92, %91 : vector<256x128xf32>
    %94 = arith.mulf %87, %93 : vector<256x128xf32>
    %cst_36 = arith.constant 0.166666672 : f32
    %95 = vector.broadcast %cst_36 : f32 to vector<256x128xf32>
    %96 = arith.mulf %94, %95 : vector<256x128xf32>
    %cst_37 = arith.constant dense<0.000000e+00> : vector<128xf32>
    %97 = vector.multi_reduction <add>, %96, %cst_37 [0] : vector<256x128xf32> to vector<128xf32>
    %98 = vector.shape_cast %97 : vector<128xf32> to vector<1x128xf32>
    %cst_38 = arith.constant 2.560000e+02 : f32
    %99 = vector.broadcast %cst_38 : f32 to vector<1x128xf32>
    %100 = arith.divf %98, %99 : vector<1x128xf32>
    %101 = arith.truncf %100 : vector<1x128xf32> to vector<1x128xbf16>
    %c0_39 = arith.constant 0 : index
    %c0_40 = arith.constant 0 : index
    %102 = vector.load %arg7[%c0_39, %c0_40] : memref<128x128xbf16, #tpu.memory_space<vmem>>, vector<128x128xbf16>
    %cst_41 = arith.constant dense<0.000000e+00> : vector<1x128xf32>
    %103 = tpu.matmul %101, %102, %cst_41 {dimension_numbers = #tpu.dot_dimension_numbers<[1], [0], [0], [1], [0, 0, 1, 1], [], []>} : vector<1x128xbf16>, vector<128x128xbf16>, vector<1x128xf32> -> vector<1x128xf32>
    %c0_42 = arith.constant 0 : index
    %c0_43 = arith.constant 0 : index
    %104 = vector.load %arg8[%c0_42, %c0_43] : memref<1x128xf32, #tpu.memory_space<vmem>>, vector<1x128xf32>
    %105 = arith.addf %103, %104 : vector<1x128xf32>
    %cst_44 = arith.constant 3.000000e+00 : f32
    %106 = vector.broadcast %cst_44 : f32 to vector<1x128xf32>
    %107 = arith.addf %105, %106 : vector<1x128xf32>
    %cst_45 = arith.constant 0.000000e+00 : f32
    %cst_46 = arith.constant 6.000000e+00 : f32
    %108 = vector.broadcast %cst_45 : f32 to vector<1x128xf32>
    %109 = arith.maximumf %108, %107 : vector<1x128xf32>
    %110 = vector.broadcast %cst_46 : f32 to vector<1x128xf32>
    %111 = arith.minimumf %110, %109 : vector<1x128xf32>
    %112 = arith.mulf %105, %111 : vector<1x128xf32>
    %cst_47 = arith.constant 0.166666672 : f32
    %113 = vector.broadcast %cst_47 : f32 to vector<1x128xf32>
    %114 = arith.mulf %112, %113 : vector<1x128xf32>
    %115 = arith.truncf %114 : vector<1x128xf32> to vector<1x128xbf16>
    %c0_48 = arith.constant 0 : index
    %c0_49 = arith.constant 0 : index
    %116 = vector.load %arg9[%c0_48, %c0_49] : memref<128x128xbf16, #tpu.memory_space<vmem>>, vector<128x128xbf16>
    %cst_50 = arith.constant dense<0.000000e+00> : vector<1x128xf32>
    %117 = tpu.matmul %115, %116, %cst_50 {dimension_numbers = #tpu.dot_dimension_numbers<[1], [0], [0], [1], [0, 0, 1, 1], [], []>} : vector<1x128xbf16>, vector<128x128xbf16>, vector<1x128xf32> -> vector<1x128xf32>
    %c0_51 = arith.constant 0 : index
    %c0_52 = arith.constant 0 : index
    %118 = vector.load %arg10[%c0_51, %c0_52] : memref<1x128xf32, #tpu.memory_space<vmem>>, vector<1x128xf32>
    %119 = arith.addf %117, %118 : vector<1x128xf32>
    %120 = vector.shape_cast %119 : vector<1x128xf32> to vector<1x1x128xf32>
    %c0_53 = arith.constant 0 : index
    %c0_54 = arith.constant 0 : index
    %c0_55 = arith.constant 0 : index
    %121 = vector.load %arg11[%c0_53, %c0_54, %c0_55] : memref<1x1x128xf32, #tpu.memory_space<vmem>>, vector<1x1x128xf32>
    tpu.vector_store %arg11[%c0_53, %c0_54, %c0_55], %120 {strides = array<i32>} : memref<1x1x128xf32, #tpu.memory_space<vmem>>, vector<1x1x128xf32>,
    return
  }
  func.func @transform_0(%arg0: i32) -> (i32, i32, i32) {
    %c0_i32 = arith.constant 0 : i32
    %c0_i32_0 = arith.constant 0 : i32
    %c0_i32_1 = arith.constant 0 : i32
    return %arg0, %c0_i32, %c0_i32_0 : i32, i32, i32
  }
  func.func @transform_1(%arg0: i32) -> (i32, i32) {
    %c0_i32 = arith.constant 0 : i32
    %c0_i32_0 = arith.constant 0 : i32
    %c0_i32_1 = arith.constant 0 : i32
    return %c0_i32, %c0_i32_0 : i32, i32
  }
  func.func @transform_2(%arg0: i32) -> (i32, i32) {
    %c0_i32 = arith.constant 0 : i32
    %c0_i32_0 = arith.constant 0 : i32
    %c0_i32_1 = arith.constant 0 : i32
    return %c0_i32, %c0_i32_0 : i32, i32
  }
  func.func @transform_3(%arg0: i32) -> (i32, i32) {
    %c0_i32 = arith.constant 0 : i32
    %c0_i32_0 = arith.constant 0 : i32
    %c0_i32_1 = arith.constant 0 : i32
    return %c0_i32, %c0_i32_0 : i32, i32
  }
  func.func @transform_4(%arg0: i32) -> (i32, i32) {
    %c0_i32 = arith.constant 0 : i32
    %c0_i32_0 = arith.constant 0 : i32
    %c0_i32_1 = arith.constant 0 : i32
    return %c0_i32, %c0_i32_0 : i32, i32
  }
  func.func @transform_5(%arg0: i32) -> (i32, i32) {
    %c0_i32 = arith.constant 0 : i32
    %c0_i32_0 = arith.constant 0 : i32
    %c0_i32_1 = arith.constant 0 : i32
    return %c0_i32, %c0_i32_0 : i32, i32
  }
  func.func @transform_6(%arg0: i32) -> (i32, i32) {
    %c0_i32 = arith.constant 0 : i32
    %c0_i32_0 = arith.constant 0 : i32
    %c0_i32_1 = arith.constant 0 : i32
    return %c0_i32, %c0_i32_0 : i32, i32
  }
  func.func @transform_7(%arg0: i32) -> (i32, i32) {
    %c0_i32 = arith.constant 0 : i32
    %c0_i32_0 = arith.constant 0 : i32
    %c0_i32_1 = arith.constant 0 : i32
    return %c0_i32, %c0_i32_0 : i32, i32
  }
  func.func @transform_8(%arg0: i32) -> (i32, i32) {
    %c0_i32 = arith.constant 0 : i32
    %c0_i32_0 = arith.constant 0 : i32
    %c0_i32_1 = arith.constant 0 : i32
    return %c0_i32, %c0_i32_0 : i32, i32
  }
  func.func @transform_9(%arg0: i32) -> (i32, i32) {
    %c0_i32 = arith.constant 0 : i32
    %c0_i32_0 = arith.constant 0 : i32
    %c0_i32_1 = arith.constant 0 : i32
    return %c0_i32, %c0_i32_0 : i32, i32
  }
  func.func @transform_10(%arg0: i32) -> (i32, i32, i32) {
    %c0_i32 = arith.constant 0 : i32
    %c0_i32_0 = arith.constant 0 : i32
    %c0_i32_1 = arith.constant 0 : i32
    return %arg0, %c0_i32, %c0_i32_0 : i32, i32, i32
  }
}

</mosaic_0001>

<llo_original>
// kernel: reidnet_forward.1
$region0: #{reidnet_forward.1}
  #allocation0 [shape = 'u32[]', space=smem, size = 0x4, offset = 0x4, fixed_abs, tag = 'smem constant byte address 0x4 - core index']
  #allocation1 [shape = 'u32[144,128]{1,0:T(1,128)}', space=vmem, size = 0x12000, scoped, tag = 'internal scratch']
  #allocation2 [shape = 'f32[18,18,128]{2,1,0:T(8,128)}', space=vmem, size = 0x36000, scoped, tag = 'scratch operand']
  %s0 = inlined_call_operand.vmem [shape: bf16[2,256,32], index: 0, kind: input, shape index: {}]
  %s1 = inlined_call_operand.vmem [shape: bf16[32,128], index: 1, kind: input, shape index: {}]
  %s2 = inlined_call_operand.vmem [shape: f32[1,128], index: 2, kind: input, shape index: {}]
  %s3 = inlined_call_operand.vmem [shape: f32[16,128], index: 3, kind: input, shape index: {}]
  %s4 = inlined_call_operand.vmem [shape: bf16[128,128], index: 4, kind: input, shape index: {}]
  %s5 = inlined_call_operand.vmem [shape: f32[1,128], index: 5, kind: input, shape index: {}]
  %s6 = inlined_call_operand.vmem [shape: bf16[128,128], index: 6, kind: input, shape index: {}]
  %s7 = inlined_call_operand.vmem [shape: f32[1,128], index: 7, kind: input, shape index: {}]
  %s8 = inlined_call_operand.vmem [shape: bf16[128,128], index: 8, kind: input, shape index: {}]
  %s9 = inlined_call_operand.vmem [shape: f32[1,128], index: 9, kind: input, shape index: {}]
  %s10 = inlined_call_operand.hbm [shape: f32[2,1,128], index: 10, kind: output, shape index: {}]
  %s11 = sld [smem:[#allocation0]]
  $region73: #{reidnet_forward.1} parent=0
    _
  %s13 = ssub.s32 1, %s11
  %s14 = scalar_select 0, %s13, %s11
  $region1: #{reidnet_forward.1} parent=0
    #allocation3 [shape = 'u8[1024]{0}', space=vmem, size = 0x400, scoped, tag = 'output window, operand 0']
    #allocation4 [shape = 's32[2]{0}', space=sflag, size = 0x8, scoped, tag = 'scoped memory for reidnet_forward.1']
    %15 = vsyncpa [#allocation4], 0
    %s16 = scalar_lea.sflag [#allocation4], 1
    %17 = vsyncpa %s16, 0
    loop: start=0, step=1, limit=4
    $region2: #{reidnet_forward.1} parent=1 // loop_pre_header
      _
    $region3: #{reidnet_forward.1} parent=1 // loop_header
      %s19 = sphi 0, %s23
      %p20 = scmp.ge.s32.totalorder %s19, 4
      %s29 = sphi 0, %s31
      %s32 = sphi 0, %s29
      %s33 = sphi 0, %s32
      %s49 = sphi 0, %s33
      %s53 = sphi 0, %s53
      %s55 = sphi 0, %s53
      %s56 = sphi 0, %s55
      %s70 = sphi 0, %s56
      %s74 = sphi 0, %s74
      %s76 = sphi 0, %s74
      %s77 = sphi 0, %s76
      %s91 = sphi 0, %s77
      %s95 = sphi 0, %s95
      %s97 = sphi 0, %s95
      %s98 = sphi 0, %s97
      %s112 = sphi 0, %s98
      %s116 = sphi 0, %s116
      %s118 = sphi 0, %s116
      %s119 = sphi 0, %s118
      %s133 = sphi 0, %s119
      %s137 = sphi 0, %s137
      %s139 = sphi 0, %s137
      %s140 = sphi 0, %s139
      %s154 = sphi 0, %s140
      %s158 = sphi 0, %s158
      %s160 = sphi 0, %s158
      %s161 = sphi 0, %s160
      %s175 = sphi 0, %s161
      %s179 = sphi 0, %s179
      %s181 = sphi 0, %s179
      %s182 = sphi 0, %s181
      %s196 = sphi 0, %s182
      %s200 = sphi 0, %s200
      %s202 = sphi 0, %s200
      %s203 = sphi 0, %s202
      %s217 = sphi 0, %s203
      %s221 = sphi 0, %s221
      %s223 = sphi 0, %s221
      %s224 = sphi 0, %s223
      %s238 = sphi 0, %s224
      %s244 = sphi 0, %s246
      %s247 = sphi 0, %s244
      %s248 = sphi 0, %s247
      %s264 = sphi 0, %s248
    $region4: #{reidnet_forward.1} parent=1 // loop_header_branch
      %22 = sbr.rel (%p20) target = $region8
    $region5: #{reidnet_forward.1} parent=1 // loop_body
      %s24 = ssub.s32 %s19, 1
      %s25 = ssub.s32 %s19, 2
      %s26 = sadd.s32 %s19, 1
      %s27 = ssub.s32 %s19, %s26
      %p28 = scmp.eq.s32.totalorder %s27, 0
      %s30 = sadd.s32 %s29, 1
      %s31 = scalar_select %p28, %s29, %s30
      %p34 = pneg %p28
      %p35 = scmp.eq.s32.totalorder %s19, 1
      %p36 = por %p34, %p35
      %p37 = scmp.ne.s32.totalorder %s29, %s32
      %p38 = scmp.eq.s32.totalorder %s19, 0
      %p39 = por %p37, %p38
      %p40 = scmp.ne.s32.totalorder %s29, %s32
      %p41 = scmp.eq.s32.totalorder %s24, 1
      %p42 = por %p40, %p41
      %p43 = scmp.ne.s32.totalorder %s32, %s33
      %p44 = scmp.eq.s32.totalorder %s24, 0
      %p45 = por %p43, %p44
      %p46 = scmp.ne.s32.totalorder %s32, %s33
      %p47 = scmp.eq.s32.totalorder %s25, 1
      %p48 = por %p46, %p47
      %p50 = scmp.ne.s32.totalorder %s33, %s49
      %p51 = scmp.eq.s32.totalorder %s25, 0
      %p52 = por %p50, %p51
      %s54 = sadd.s32 %s53, 1
      %p57 = scmp.eq.s32.totalorder %s19, 1
      %p58 = scmp.ne.s32.totalorder %s53, %s55
      %p59 = scmp.eq.s32.totalorder %s19, 0
      %p60 = por %p58, %p59
      %p61 = scmp.ne.s32.totalorder %s53, %s55
      %p62 = scmp.eq.s32.totalorder %s24, 1
      %p63 = por %p61, %p62
      %p64 = scmp.ne.s32.totalorder %s55, %s56
      %p65 = scmp.eq.s32.totalorder %s24, 0
      %p66 = por %p64, %p65
      %p67 = scmp.ne.s32.totalorder %s55, %s56
      %p68 = scmp.eq.s32.totalorder %s25, 1
      %p69 = por %p67, %p68
      %p71 = scmp.ne.s32.totalorder %s56, %s70
      %p72 = scmp.eq.s32.totalorder %s25, 0
      %p73 = por %p71, %p72
      %s75 = sadd.s32 %s74, 1
      %p78 = scmp.eq.s32.totalorder %s19, 1
      %p79 = scmp.ne.s32.totalorder %s74, %s76
      %p80 = scmp.eq.s32.totalorder %s19, 0
      %p81 = por %p79, %p80
      %p82 = scmp.ne.s32.totalorder %s74, %s76
      %p83 = scmp.eq.s32.totalorder %s24, 1
      %p84 = por %p82, %p83
      %p85 = scmp.ne.s32.totalorder %s76, %s77
      %p86 = scmp.eq.s32.totalorder %s24, 0
      %p87 = por %p85, %p86
      %p88 = scmp.ne.s32.totalorder %s76, %s77
      %p89 = scmp.eq.s32.totalorder %s25, 1
      %p90 = por %p88, %p89
      %p92 = scmp.ne.s32.totalorder %s77, %s91
      %p93 = scmp.eq.s32.totalorder %s25, 0
      %p94 = por %p92, %p93
      %s96 = sadd.s32 %s95, 1
      %p99 = scmp.eq.s32.totalorder %s19, 1
      %p100 = scmp.ne.s32.totalorder %s95, %s97
      %p101 = scmp.eq.s32.totalorder %s19, 0
      %p102 = por %p100, %p101
      %p103 = scmp.ne.s32.totalorder %s95, %s97
      %p104 = scmp.eq.s32.totalorder %s24, 1
      %p105 = por %p103, %p104
      %p106 = scmp.ne.s32.totalorder %s97, %s98
      %p107 = scmp.eq.s32.totalorder %s24, 0
      %p108 = por %p106, %p107
      %p109 = scmp.ne.s32.totalorder %s97, %s98
      %p110 = scmp.eq.s32.totalorder %s25, 1
      %p111 = por %p109, %p110
      %p113 = scmp.ne.s32.totalorder %s98, %s112
      %p114 = scmp.eq.s32.totalorder %s25, 0
      %p115 = por %p113, %p114
      %s117 = sadd.s32 %s116, 1
      %p120 = scmp.eq.s32.totalorder %s19, 1
      %p121 = scmp.ne.s32.totalorder %s116, %s118
      %p122 = scmp.eq.s32.totalorder %s19, 0
      %p123 = por %p121, %p122
      %p124 = scmp.ne.s32.totalorder %s116, %s118
      %p125 = scmp.eq.s32.totalorder %s24, 1
      %p126 = por %p124, %p125
      %p127 = scmp.ne.s32.totalorder %s118, %s119
      %p128 = scmp.eq.s32.totalorder %s24, 0
      %p129 = por %p127, %p128
      %p130 = scmp.ne.s32.totalorder %s118, %s119
      %p131 = scmp.eq.s32.totalorder %s25, 1
      %p132 = por %p130, %p131
      %p134 = scmp.ne.s32.totalorder %s119, %s133
      %p135 = scmp.eq.s32.totalorder %s25, 0
      %p136 = por %p134, %p135
      %s138 = sadd.s32 %s137, 1
      %p141 = scmp.eq.s32.totalorder %s19, 1
      %p142 = scmp.ne.s32.totalorder %s137, %s139
      %p143 = scmp.eq.s32.totalorder %s19, 0
      %p144 = por %p142, %p143
      %p145 = scmp.ne.s32.totalorder %s137, %s139
      %p146 = scmp.eq.s32.totalorder %s24, 1
      %p147 = por %p145, %p146
      %p148 = scmp.ne.s32.totalorder %s139, %s140
      %p149 = scmp.eq.s32.totalorder %s24, 0
      %p150 = por %p148, %p149
      %p151 = scmp.ne.s32.totalorder %s139, %s140
      %p152 = scmp.eq.s32.totalorder %s25, 1
      %p153 = por %p151, %p152
      %p155 = scmp.ne.s32.totalorder %s140, %s154
      %p156 = scmp.eq.s32.totalorder %s25, 0
      %p157 = por %p155, %p156
      %s159 = sadd.s32 %s158, 1
      %p162 = scmp.eq.s32.totalorder %s19, 1
      %p163 = scmp.ne.s32.totalorder %s158, %s160
      %p164 = scmp.eq.s32.totalorder %s19, 0
      %p165 = por %p163, %p164
      %p166 = scmp.ne.s32.totalorder %s158, %s160
      %p167 = scmp.eq.s32.totalorder %s24, 1
      %p168 = por %p166, %p167
      %p169 = scmp.ne.s32.totalorder %s160, %s161
      %p170 = scmp.eq.s32.totalorder %s24, 0
      %p171 = por %p169, %p170
      %p172 = scmp.ne.s32.totalorder %s160, %s161
      %p173 = scmp.eq.s32.totalorder %s25, 1
      %p174 = por %p172, %p173
      %p176 = scmp.ne.s32.totalorder %s161, %s175
      %p177 = scmp.eq.s32.totalorder %s25, 0
      %p178 = por %p176, %p177
      %s180 = sadd.s32 %s179, 1
      %p183 = scmp.eq.s32.totalorder %s19, 1
      %p184 = scmp.ne.s32.totalorder %s179, %s181
      %p185 = scmp.eq.s32.totalorder %s19, 0
      %p186 = por %p184, %p185
      %p187 = scmp.ne.s32.totalorder %s179, %s181
      %p188 = scmp.eq.s32.totalorder %s24, 1
      %p189 = por %p187, %p188
      %p190 = scmp.ne.s32.totalorder %s181, %s182
      %p191 = scmp.eq.s32.totalorder %s24, 0
      %p192 = por %p190, %p191
      %p193 = scmp.ne.s32.totalorder %s181, %s182
      %p194 = scmp.eq.s32.totalorder %s25, 1
      %p195 = por %p193, %p194
      %p197 = scmp.ne.s32.totalorder %s182, %s196
      %p198 = scmp.eq.s32.totalorder %s25, 0
      %p199 = por %p197, %p198
      %s201 = sadd.s32 %s200, 1
      %p204 = scmp.eq.s32.totalorder %s19, 1
      %p205 = scmp.ne.s32.totalorder %s200, %s202
      %p206 = scmp.eq.s32.totalorder %s19, 0
      %p207 = por %p205, %p206
      %p208 = scmp.ne.s32.totalorder %s200, %s202
      %p209 = scmp.eq.s32.totalorder %s24, 1
      %p210 = por %p208, %p209
      %p211 = scmp.ne.s32.totalorder %s202, %s203
      %p212 = scmp.eq.s32.totalorder %s24, 0
      %p213 = por %p211, %p212
      %p214 = scmp.ne.s32.totalorder %s202, %s203
      %p215 = scmp.eq.s32.totalorder %s25, 1
      %p216 = por %p214, %p215
      %p218 = scmp.ne.s32.totalorder %s203, %s217
      %p219 = scmp.eq.s32.totalorder %s25, 0
      %p220 = por %p218, %p219
      %s222 = sadd.s32 %s221, 1
      %p225 = scmp.eq.s32.totalorder %s19, 1
      %p226 = scmp.ne.s32.totalorder %s221, %s223
      %p227 = scmp.eq.s32.totalorder %s19, 0
      %p228 = por %p226, %p227
      %p229 = scmp.ne.s32.totalorder %s221, %s223
      %p230 = scmp.eq.s32.totalorder %s24, 1
      %p231 = por %p229, %p230
      %p232 = scmp.ne.s32.totalorder %s223, %s224
      %p233 = scmp.eq.s32.totalorder %s24, 0
      %p234 = por %p232, %p233
      %p235 = scmp.ne.s32.totalorder %s223, %s224
      %p236 = scmp.eq.s32.totalorder %s25, 1
      %p237 = por %p235, %p236
      %p239 = scmp.ne.s32.totalorder %s224, %s238
      %p240 = scmp.eq.s32.totalorder %s25, 0
      %p241 = por %p239, %p240
      %s242 = ssub.s32 %s19, %s26
      %p243 = scmp.eq.s32.totalorder %s242, 0
      %s245 = sadd.s32 %s244, 1
      %s246 = scalar_select %p243, %s244, %s245
      %p249 = pneg %p243
      %p250 = scmp.eq.s32.totalorder %s19, 1
      %p251 = por %p249, %p250
      %p252 = scmp.ne.s32.totalorder %s244, %s247
      %p253 = scmp.eq.s32.totalorder %s19, 0
      %p254 = por %p252, %p253
      %p255 = scmp.ne.s32.totalorder %s244, %s247
      %p256 = scmp.eq.s32.totalorder %s24, 1
      %p257 = por %p255, %p256
      %p258 = scmp.ne.s32.totalorder %s247, %s248
      %p259 = scmp.eq.s32.totalorder %s24, 0
      %p260 = por %p258, %p259
      %p261 = scmp.ne.s32.totalorder %s247, %s248
      %p262 = scmp.eq.s32.totalorder %s25, 1
      %p263 = por %p261, %p262
      %p265 = scmp.ne.s32.totalorder %s248, %s264
      %p266 = scmp.eq.s32.totalorder %s25, 0
      %p267 = por %p265, %p266
      %p268 = scmp.le.s32.totalorder 1, %s19
      %p269 = scmp.lt.s32.totalorder %s19, 3
      %p270 = pnand %p268, %p269
      %p271 = pneg %p270
      // Predicated region
      $region9: #{reidnet_forward.1} parent=5 // pred_check
        _
      $region10: #{reidnet_forward.1} parent=5 // pred_check_branch
        %273 = sbr.rel (%p270) target = $region12
      $region11: #{reidnet_forward.1} parent=5 // pred_region
        %s274 = ssub.s32 %s19, 1
        // Predicated region
        $region13: #{reidnet_forward.1} parent=11 // pred_check
          %p275 = pneg %p66
        $region14: #{reidnet_forward.1} parent=11 // pred_check_branch
          %277 = sbr.rel (%p275) target = $region16
        $region15: #{reidnet_forward.1} parent=11 // pred_region
          _
        $region16: #{reidnet_forward.1} parent=11 // pred_fallthru
          _
        // Predicated region
        $region17: #{reidnet_forward.1} parent=11 // pred_check
          %p278 = pneg %p87
        $region18: #{reidnet_forward.1} parent=11 // pred_check_branch
          %280 = sbr.rel (%p278) target = $region20
        $region19: #{reidnet_forward.1} parent=11 // pred_region
          _
        $region20: #{reidnet_forward.1} parent=11 // pred_fallthru
          _
        // Predicated region
        $region21: #{reidnet_forward.1} parent=11 // pred_check
          %p281 = pneg %p108
        $region22: #{reidnet_forward.1} parent=11 // pred_check_branch
          %283 = sbr.rel (%p281) target = $region24
        $region23: #{reidnet_forward.1} parent=11 // pred_region
          _
        $region24: #{reidnet_forward.1} parent=11 // pred_fallthru
          _
        // Predicated region
        $region25: #{reidnet_forward.1} parent=11 // pred_check
          %p284 = pneg %p129
        $region26: #{reidnet_forward.1} parent=11 // pred_check_branch
          %286 = sbr.rel (%p284) target = $region28
        $region27: #{reidnet_forward.1} parent=11 // pred_region
          _
        $region28: #{reidnet_forward.1} parent=11 // pred_fallthru
          _
        // Predicated region
        $region29: #{reidnet_forward.1} parent=11 // pred_check
          %p287 = pneg %p150
        $region30: #{reidnet_forward.1} parent=11 // pred_check_branch
          %289 = sbr.rel (%p287) target = $region32
        $region31: #{reidnet_forward.1} parent=11 // pred_region
          _
        $region32: #{reidnet_forward.1} parent=11 // pred_fallthru
          _
        // Predicated region
        $region33: #{reidnet_forward.1} parent=11 // pred_check
          %p290 = pneg %p171
        $region34: #{reidnet_forward.1} parent=11 // pred_check_branch
          %292 = sbr.rel (%p290) target = $region36
        $region35: #{reidnet_forward.1} parent=11 // pred_region
          _
        $region36: #{reidnet_forward.1} parent=11 // pred_fallthru
          _
        // Predicated region
        $region37: #{reidnet_forward.1} parent=11 // pred_check
          %p293 = pneg %p192
        $region38: #{reidnet_forward.1} parent=11 // pred_check_branch
          %295 = sbr.rel (%p293) target = $region40
        $region39: #{reidnet_forward.1} parent=11 // pred_region
          _
        $region40: #{reidnet_forward.1} parent=11 // pred_fallthru
          _
        // Predicated region
        $region41: #{reidnet_forward.1} parent=11 // pred_check
          %p296 = pneg %p213
        $region42: #{reidnet_forward.1} parent=11 // pred_check_branch
          %298 = sbr.rel (%p296) target = $region44
        $region43: #{reidnet_forward.1} parent=11 // pred_region
          _
        $region44: #{reidnet_forward.1} parent=11 // pred_fallthru
          _
        // Predicated region
        $region45: #{reidnet_forward.1} parent=11 // pred_check
          %p299 = pneg %p234
        $region46: #{reidnet_forward.1} parent=11 // pred_check_branch
          %301 = sbr.rel (%p299) target = $region48
        $region47: #{reidnet_forward.1} parent=11 // pred_region
          _
        $region48: #{reidnet_forward.1} parent=11 // pred_fallthru
          _
      $region12: #{reidnet_forward.1} parent=5 // pred_fallthru
        _
      %p302 = scmp.lt.s32.totalorder %s19, 2
      // Predicated region
      $region49: #{reidnet_forward.1} parent=5 // pred_check
        %p303 = pneg %p302
      $region50: #{reidnet_forward.1} parent=5 // pred_check_branch
        %305 = sbr.rel (%p303) target = $region52
      $region51: #{reidnet_forward.1} parent=5 // pred_region
        // Predicated region
        $region53: #{reidnet_forward.1} parent=51 // pred_check
          %p306 = pneg %p39
        $region54: #{reidnet_forward.1} parent=51 // pred_check_branch
          %308 = sbr.rel (%p306) target = $region56
        $region55: #{reidnet_forward.1} parent=51 // pred_region
          %p309 = scmp.lt.s32.totalorder %s19, 1
          %s310 = scalar_select %p309, %s19, 1
          %s311 = smul.addr %s310, 32
          %s312 = smul.addr %s311, 4
          %s313 = scalar_lea.vmem %s0, %s312
        $region56: #{reidnet_forward.1} parent=51 // pred_fallthru
          _
      $region52: #{reidnet_forward.1} parent=5 // pred_fallthru
        _
      %p314 = scmp.le.s32.totalorder 1, %s19
      %p315 = scmp.lt.s32.totalorder %s19, 3
      %p316 = pnand %p314, %p315
      %p317 = pneg %p316
      // Predicated region
      $region57: #{reidnet_forward.1} parent=5 // pred_check
        _
      $region58: #{reidnet_forward.1} parent=5 // pred_check_branch
        %319 = sbr.rel (%p316) target = $region60
      $region59: #{reidnet_forward.1} parent=5 // pred_region
        %s320 = ssub.s32 %s19, 1
        %p321 = scmp.lt.s32.totalorder %s24, 1
        %s322 = scalar_select %p321, %s24, 1
        %s323 = smul.addr %s322, 32
        %s324 = smul.addr %s323, 4
        %s325 = scalar_lea.vmem %s0, %s324
        %p326 = pneg %p45
        %p327 = pneg %p42
        %p328 = pneg %p66
        %p329 = pneg %p63
        %p330 = pneg %p87
        %p331 = pneg %p84
        %p332 = pneg %p108
        %p333 = pneg %p105
        %p334 = pneg %p129
        %p335 = pneg %p126
        %p336 = pneg %p150
        %p337 = pneg %p147
        %p338 = pneg %p171
        %p339 = pneg %p168
        %p340 = pneg %p192
        %p341 = pneg %p189
        %p342 = pneg %p213
        %p343 = pneg %p210
        %p344 = pneg %p234
        %p345 = pneg %p231
        %p346 = pneg %p260
        %p347 = pneg %p257
        %s348 = sand.u32 %s247, 1
        %s349 = scalar_lea.sflag [#allocation4], %s348
        %s350 = sand.u32 %s247, 1
        %s351 = scalar_lea.vmem [#allocation3], %s350
        %p352 = scmp.lt.s32.totalorder %s24, 1
        %s353 = scalar_select %p352, %s24, 1
        %s354 = smul.addr %s353, 32
        %s355 = smul.addr %s354, 4
        %s356 = scalar_lea.vmem %s0, %s355
        %v358 = vld [vmem:[%s356] sm:$0xf]
        %v359 = vld [vmem:[%s356 + $0x4] sm:$0xf]
        %v360 = vld [vmem:[%s356 + $0x8] sm:$0xf]
        %v361 = vld [vmem:[%s356 + $0xc] sm:$0xf]
        %v362 = vld [vmem:[%s356 + $0x10] sm:$0xf]
        %v363 = vld [vmem:[%s356 + $0x14] sm:$0xf]
        %v364 = vld [vmem:[%s356 + $0x18] sm:$0xf]
        %v365 = vld [vmem:[%s356 + $0x1c] sm:$0xf]
        %v366 = vld [vmem:[%s356 + $0x20] sm:$0xf]
        %v367 = vld [vmem:[%s356 + $0x24] sm:$0xf]
        %v368 = vld [vmem:[%s356 + $0x28] sm:$0xf]
        %v369 = vld [vmem:[%s356 + $0x2c] sm:$0xf]
        %v370 = vld [vmem:[%s356 + $0x30] sm:$0xf]
        %v371 = vld [vmem:[%s356 + $0x34] sm:$0xf]
        %v372 = vld [vmem:[%s356 + $0x38] sm:$0xf]
        %v373 = vld [vmem:[%s356 + $0x3c] sm:$0xf]
        %v374 = vld [vmem:[%s356 + $0x40] sm:$0xf]
        %v375 = vld [vmem:[%s356 + $0x44] sm:$0xf]
        %v376 = vld [vmem:[%s356 + $0x48] sm:$0xf]
        %v377 = vld [vmem:[%s356 + $0x4c] sm:$0xf]
        %v378 = vld [vmem:[%s356 + $0x50] sm:$0xf]
        %v379 = vld [vmem:[%s356 + $0x54] sm:$0xf]
        %v380 = vld [vmem:[%s356 + $0x58] sm:$0xf]
        %v381 = vld [vmem:[%s356 + $0x5c] sm:$0xf]
        %v382 = vld [vmem:[%s356 + $0x60] sm:$0xf]
        %v383 = vld [vmem:[%s356 + $0x64] sm:$0xf]
        %v384 = vld [vmem:[%s356 + $0x68] sm:$0xf]
        %v385 = vld [vmem:[%s356 + $0x6c] sm:$0xf]
        %v386 = vld [vmem:[%s356 + $0x70] sm:$0xf]
        %v387 = vld [vmem:[%s356 + $0x74] sm:$0xf]
        %v388 = vld [vmem:[%s356 + $0x78] sm:$0xf]
        %v389 = vld [vmem:[%s356 + $0x7c] sm:$0xf]
        %v390 = vld [vmem:[%s1] sm:$0xf]
        %v391 = vld [vmem:[%s1 + $0x4] sm:$0xf]
        %v392 = vld [vmem:[%s1 + $0x8] sm:$0xf]
        %v393 = vld [vmem:[%s1 + $0xc] sm:$0xf]
        %v394 = vld [vmem:[%s2] sm:$0x1]
        %v396 = vlaneseq
        %v397 = vshrl.u32 %v396, 7
        %v398 = vsub.s32 0, %v397
        %v399 = vrot.slane %v394, %v398
        %v433 = vunpack.c.l.b16 %v358
        %v434 = vunpack.c.l.b16 %v359
        %v435 = vunpack.c.l.b16 %v360
        %v436 = vunpack.c.l.b16 %v361
        %v437 = vunpack.c.l.b16 %v362
        %v438 = vunpack.c.l.b16 %v363
        %v439 = vunpack.c.l.b16 %v364
        %v440 = vunpack.c.l.b16 %v365
        %v441 = vunpack.c.l.b16 %v366
        %v442 = vunpack.c.l.b16 %v367
        %v443 = vunpack.c.l.b16 %v368
        %v444 = vunpack.c.l.b16 %v369
        %v445 = vunpack.c.l.b16 %v370
        %v446 = vunpack.c.l.b16 %v371
        %v447 = vunpack.c.l.b16 %v372
        %v448 = vunpack.c.l.b16 %v373
        %v449 = vunpack.c.l.b16 %v374
        %v450 = vunpack.c.l.b16 %v375
        %v451 = vunpack.c.l.b16 %v376
        %v452 = vunpack.c.l.b16 %v377
        %v453 = vunpack.c.l.b16 %v378
        %v454 = vunpack.c.l.b16 %v379
        %v455 = vunpack.c.l.b16 %v380
        %v456 = vunpack.c.l.b16 %v381
        %v457 = vunpack.c.l.b16 %v382
        %v458 = vunpack.c.l.b16 %v383
        %v459 = vunpack.c.l.b16 %v384
        %v460 = vunpack.c.l.b16 %v385
        %v461 = vunpack.c.l.b16 %v386
        %v462 = vunpack.c.l.b16 %v387
        %v463 = vunpack.c.l.b16 %v388
        %v464 = vunpack.c.l.b16 %v389
        %v465 = vpack.c.b16 %v434, %v433
        %v466 = vpack.c.b16 %v436, %v435
        %v467 = vpack.c.b16 %v438, %v437
        %v468 = vpack.c.b16 %v440, %v439
        %v469 = vpack.c.b16 %v442, %v441
        %v470 = vpack.c.b16 %v444, %v443
        %v471 = vpack.c.b16 %v446, %v445
        %v472 = vpack.c.b16 %v448, %v447
        %v473 = vpack.c.b16 %v450, %v449
        %v474 = vpack.c.b16 %v452, %v451
        %v475 = vpack.c.b16 %v454, %v453
        %v476 = vpack.c.b16 %v456, %v455
        %v477 = vpack.c.b16 %v458, %v457
        %v478 = vpack.c.b16 %v460, %v459
        %v479 = vpack.c.b16 %v462, %v461
        %v480 = vpack.c.b16 %v464, %v463
        %v485 = vunpack.c.l.b16 %v390
        %v486 = vunpack.c.l.b16 %v391
        %v487 = vunpack.c.l.b16 %v392
        %v488 = vunpack.c.l.b16 %v393
        %v489 = vpack.c.b16 %v486, %v485
        %v490 = vpack.c.b16 %v488, %v487
        %vm493 = vcmask 261120
        %v495 = vsel %vm493, %v465, 0
        %v498 = vsel %vm493, %v466, 0
        %v501 = vsel %vm493, %v467, 0
        %v504 = vsel %vm493, %v468, 0
        %v507 = vsel %vm493, %v469, 0
        %v510 = vsel %vm493, %v470, 0
        %v513 = vsel %vm493, %v471, 0
        %v516 = vsel %vm493, %v472, 0
        %v519 = vsel %vm493, %v473, 0
        %v522 = vsel %vm493, %v474, 0
        %v525 = vsel %vm493, %v475, 0
        %v528 = vsel %vm493, %v476, 0
        %v531 = vsel %vm493, %v477, 0
        %v534 = vsel %vm493, %v478, 0
        %v537 = vsel %vm493, %v479, 0
        %v540 = vsel %vm493, %v480, 0
        %542 = vmatprep.subr.bf16.mxu0 0
        %543 = vmatpush1.bf16.msra.mxu0 0
        %544 = vmatprep.subr.bf16.mxu0 0
        %545 = vmatpush1.bf16.msra.mxu0 0
        %546 = vmatprep.subr.bf16.mxu0 0
        %547 = vmatpush1.bf16.msra.mxu0 0
        %548 = vmatprep.subr.bf16.mxu0 0
        %549 = vmatpush1.bf16.msra.mxu0 0
        %550 = vmatprep.subr.bf16.mxu0 0
        %551 = vmatpush1.bf16.msra.mxu0 0
        %552 = vmatprep.subr.bf16.mxu0 0
        %553 = vmatpush1.bf16.msra.mxu0 0
        %554 = vmatprep.subr.bf16.mxu0 0
        %555 = vmatpush1.bf16.msra.mxu0 %v490
        %556 = vmatprep.subr.bf16.mxu0 0
        %557 = vmatpush1.bf16.msra.mxu0 %v489
        %558 = vmatprep.subr.bf16.mxu0 0
        %559 = vmatpush2.bf16.msra.mxu0 0
        %560 = vmatprep.subr.bf16.mxu0 0
        %561 = vmatpush2.bf16.msra.mxu0 0
        %562 = vmatprep.subr.bf16.mxu0 0
        %563 = vmatpush2.bf16.msra.mxu0 0
        %564 = vmatprep.subr.bf16.mxu0 0
        %565 = vmatpush2.bf16.msra.mxu0 0
        %566 = vmatprep.subr.bf16.mxu0 0
        %567 = vmatpush2.bf16.msra.mxu0 0
        %568 = vmatprep.subr.bf16.mxu0 0
        %569 = vmatpush2.bf16.msra.mxu0 0
        %570 = vmatprep.subr.bf16.mxu0 0
        %571 = vmatpush2.bf16.msra.mxu0 0
        %572 = vmatprep.subr.bf16.mxu0 0
        %573 = vmatpush2.bf16.msra.mxu0 0
        %574 = vmatprep.mubr.bf16.mxu0 0
        %575 = vmatmul.mubr.bf16.gmra.mxu0 %v495
        %v576 = vpop.f32.mrf.mxu0
        %v577 = vadd.f32 %v399, %v576
        %v578 = vpop.f32.mrf.mxu0
        %v579 = vpop.f32.mrf.mxu0
        %v580 = vadd.f32 %v399, %v579
        %v581 = vpop.f32.mrf.mxu0
        %582 = vmatprep.mubr.bf16.mxu0 0
        %583 = vmatmul.mubr.bf16.gmra.mxu0 %v498
        %v584 = vpop.f32.mrf.mxu0
        %v585 = vadd.f32 %v399, %v584
        %v586 = vpop.f32.mrf.mxu0
        %v587 = vpop.f32.mrf.mxu0
        %v588 = vadd.f32 %v399, %v587
        %v589 = vpop.f32.mrf.mxu0
        %590 = vmatprep.mubr.bf16.mxu0 0
        %591 = vmatmul.mubr.bf16.gmra.mxu0 %v501
        %v592 = vpop.f32.mrf.mxu0
        %v593 = vadd.f32 %v399, %v592
        %v594 = vpop.f32.mrf.mxu0
        %v595 = vpop.f32.mrf.mxu0
        %v596 = vadd.f32 %v399, %v595
        %v597 = vpop.f32.mrf.mxu0
        %598 = vmatprep.mubr.bf16.mxu0 0
        %599 = vmatmul.mubr.bf16.gmra.mxu0 %v504
        %v600 = vpop.f32.mrf.mxu0
        %v601 = vadd.f32 %v399, %v600
        %v602 = vpop.f32.mrf.mxu0
        %v603 = vpop.f32.mrf.mxu0
        %v604 = vadd.f32 %v399, %v603
        %v605 = vpop.f32.mrf.mxu0
        %606 = vmatprep.mubr.bf16.mxu0 0
        %607 = vmatmul.mubr.bf16.gmra.mxu0 %v507
        %v608 = vpop.f32.mrf.mxu0
        %v609 = vadd.f32 %v399, %v608
        %v610 = vpop.f32.mrf.mxu0
        %v611 = vpop.f32.mrf.mxu0
        %v612 = vadd.f32 %v399, %v611
        %v613 = vpop.f32.mrf.mxu0
        %614 = vmatprep.mubr.bf16.mxu0 0
        %615 = vmatmul.mubr.bf16.gmra.mxu0 %v510
        %v616 = vpop.f32.mrf.mxu0
        %v617 = vadd.f32 %v399, %v616
        %v618 = vpop.f32.mrf.mxu0
        %v619 = vpop.f32.mrf.mxu0
        %v620 = vadd.f32 %v399, %v619
        %v621 = vpop.f32.mrf.mxu0
        %622 = vmatprep.mubr.bf16.mxu0 0
        %623 = vmatmul.mubr.bf16.gmra.mxu0 %v513
        %v624 = vpop.f32.mrf.mxu0
        %v625 = vadd.f32 %v399, %v624
        %v626 = vpop.f32.mrf.mxu0
        %v627 = vpop.f32.mrf.mxu0
        %v628 = vadd.f32 %v399, %v627
        %v629 = vpop.f32.mrf.mxu0
        %630 = vmatprep.mubr.bf16.mxu0 0
        %631 = vmatmul.mubr.bf16.gmra.mxu0 %v516
        %v632 = vpop.f32.mrf.mxu0
        %v633 = vadd.f32 %v399, %v632
        %v634 = vpop.f32.mrf.mxu0
        %v635 = vpop.f32.mrf.mxu0
        %v636 = vadd.f32 %v399, %v635
        %v637 = vpop.f32.mrf.mxu0
        %638 = vmatprep.mubr.bf16.mxu0 0
        %639 = vmatmul.mubr.bf16.gmra.mxu0 %v519
        %v640 = vpop.f32.mrf.mxu0
        %v641 = vadd.f32 %v399, %v640
        %v642 = vpop.f32.mrf.mxu0
        %v643 = vpop.f32.mrf.mxu0
        %v644 = vadd.f32 %v399, %v643
        %v645 = vpop.f32.mrf.mxu0
        %646 = vmatprep.mubr.bf16.mxu0 0
        %647 = vmatmul.mubr.bf16.gmra.mxu0 %v522
        %v648 = vpop.f32.mrf.mxu0
        %v649 = vadd.f32 %v399, %v648
        %v650 = vpop.f32.mrf.mxu0
        %v651 = vpop.f32.mrf.mxu0
        %v652 = vadd.f32 %v399, %v651
        %v653 = vpop.f32.mrf.mxu0
        %654 = vmatprep.mubr.bf16.mxu0 0
        %655 = vmatmul.mubr.bf16.gmra.mxu0 %v525
        %v656 = vpop.f32.mrf.mxu0
        %v657 = vadd.f32 %v399, %v656
        %v658 = vpop.f32.mrf.mxu0
        %v659 = vpop.f32.mrf.mxu0
        %v660 = vadd.f32 %v399, %v659
        %v661 = vpop.f32.mrf.mxu0
        %662 = vmatprep.mubr.bf16.mxu0 0
        %663 = vmatmul.mubr.bf16.gmra.mxu0 %v528
        %v664 = vpop.f32.mrf.mxu0
        %v665 = vadd.f32 %v399, %v664
        %v666 = vpop.f32.mrf.mxu0
        %v667 = vpop.f32.mrf.mxu0
        %v668 = vadd.f32 %v399, %v667
        %v669 = vpop.f32.mrf.mxu0
        %670 = vmatprep.mubr.bf16.mxu0 0
        %671 = vmatmul.mubr.bf16.gmra.mxu0 %v531
        %v672 = vpop.f32.mrf.mxu0
        %v673 = vadd.f32 %v399, %v672
        %v674 = vpop.f32.mrf.mxu0
        %v675 = vpop.f32.mrf.mxu0
        %v676 = vadd.f32 %v399, %v675
        %v677 = vpop.f32.mrf.mxu0
        %678 = vmatprep.mubr.bf16.mxu0 0
        %679 = vmatmul.mubr.bf16.gmra.mxu0 %v534
        %v680 = vpop.f32.mrf.mxu0
        %v681 = vadd.f32 %v399, %v680
        %v682 = vpop.f32.mrf.mxu0
        %v683 = vpop.f32.mrf.mxu0
        %v684 = vadd.f32 %v399, %v683
        %v685 = vpop.f32.mrf.mxu0
        %686 = vmatprep.mubr.bf16.mxu0 0
        %687 = vmatmul.mubr.bf16.gmra.mxu0 %v537
        %v688 = vpop.f32.mrf.mxu0
        %v689 = vadd.f32 %v399, %v688
        %v690 = vpop.f32.mrf.mxu0
        %v691 = vpop.f32.mrf.mxu0
        %v692 = vadd.f32 %v399, %v691
        %v693 = vpop.f32.mrf.mxu0
        %694 = vmatprep.mubr.bf16.mxu0 0
        %695 = vmatmul.mubr.bf16.gmra.mxu0 %v540
        %v696 = vpop.f32.mrf.mxu0
        %v697 = vadd.f32 %v399, %v696
        %v698 = vpop.f32.mrf.mxu0
        %v699 = vpop.f32.mrf.mxu0
        %v700 = vadd.f32 %v399, %v699
        %v701 = vpop.f32.mrf.mxu0
        %702 = vdwg.mxu0
        %v703 = vadd.f32 %v577, 3.0
        %v704 = vadd.f32 %v580, 3.0
        %v705 = vadd.f32 %v585, 3.0
        %v706 = vadd.f32 %v588, 3.0
        %v707 = vadd.f32 %v593, 3.0
        %v708 = vadd.f32 %v596, 3.0
        %v709 = vadd.f32 %v601, 3.0
        %v710 = vadd.f32 %v604, 3.0
        %v711 = vadd.f32 %v609, 3.0
        %v712 = vadd.f32 %v612, 3.0
        %v713 = vadd.f32 %v617, 3.0
        %v714 = vadd.f32 %v620, 3.0
        %v715 = vadd.f32 %v625, 3.0
        %v716 = vadd.f32 %v628, 3.0
        %v717 = vadd.f32 %v633, 3.0
        %v718 = vadd.f32 %v636, 3.0
        %v719 = vadd.f32 %v641, 3.0
        %v720 = vadd.f32 %v644, 3.0
        %v721 = vadd.f32 %v649, 3.0
        %v722 = vadd.f32 %v652, 3.0
        %v723 = vadd.f32 %v657, 3.0
        %v724 = vadd.f32 %v660, 3.0
        %v725 = vadd.f32 %v665, 3.0
        %v726 = vadd.f32 %v668, 3.0
        %v727 = vadd.f32 %v673, 3.0
        %v728 = vadd.f32 %v676, 3.0
        %v729 = vadd.f32 %v681, 3.0
        %v730 = vadd.f32 %v684, 3.0
        %v731 = vadd.f32 %v689, 3.0
        %v732 = vadd.f32 %v692, 3.0
        %v733 = vadd.f32 %v697, 3.0
        %v734 = vadd.f32 %v700, 3.0
        %v735 = vmax.f32 %v703, 0.0
        %v736 = vmax.f32 %v704, 0.0
        %v737 = vmax.f32 %v705, 0.0
        %v738 = vmax.f32 %v706, 0.0
        %v739 = vmax.f32 %v707, 0.0
        %v740 = vmax.f32 %v708, 0.0
        %v741 = vmax.f32 %v709, 0.0
        %v742 = vmax.f32 %v710, 0.0
        %v743 = vmax.f32 %v711, 0.0
        %v744 = vmax.f32 %v712, 0.0
        %v745 = vmax.f32 %v713, 0.0
        %v746 = vmax.f32 %v714, 0.0
        %v747 = vmax.f32 %v715, 0.0
        %v748 = vmax.f32 %v716, 0.0
        %v749 = vmax.f32 %v717, 0.0
        %v750 = vmax.f32 %v718, 0.0
        %v751 = vmax.f32 %v719, 0.0
        %v752 = vmax.f32 %v720, 0.0
        %v753 = vmax.f32 %v721, 0.0
        %v754 = vmax.f32 %v722, 0.0
        %v755 = vmax.f32 %v723, 0.0
        %v756 = vmax.f32 %v724, 0.0
        %v757 = vmax.f32 %v725, 0.0
        %v758 = vmax.f32 %v726, 0.0
        %v759 = vmax.f32 %v727, 0.0
        %v760 = vmax.f32 %v728, 0.0
        %v761 = vmax.f32 %v729, 0.0
        %v762 = vmax.f32 %v730, 0.0
        %v763 = vmax.f32 %v731, 0.0
        %v764 = vmax.f32 %v732, 0.0
        %v765 = vmax.f32 %v733, 0.0
        %v766 = vmax.f32 %v734, 0.0
        %v767 = vmin.f32 %v735, 6.0
        %v768 = vmin.f32 %v736, 6.0
        %v769 = vmin.f32 %v737, 6.0
        %v770 = vmin.f32 %v738, 6.0
        %v771 = vmin.f32 %v739, 6.0
        %v772 = vmin.f32 %v740, 6.0
        %v773 = vmin.f32 %v741, 6.0
        %v774 = vmin.f32 %v742, 6.0
        %v775 = vmin.f32 %v743, 6.0
        %v776 = vmin.f32 %v744, 6.0
        %v777 = vmin.f32 %v745, 6.0
        %v778 = vmin.f32 %v746, 6.0
        %v779 = vmin.f32 %v747, 6.0
        %v780 = vmin.f32 %v748, 6.0
        %v781 = vmin.f32 %v749, 6.0
        %v782 = vmin.f32 %v750, 6.0
        %v783 = vmin.f32 %v751, 6.0
        %v784 = vmin.f32 %v752, 6.0
        %v785 = vmin.f32 %v753, 6.0
        %v786 = vmin.f32 %v754, 6.0
        %v787 = vmin.f32 %v755, 6.0
        %v788 = vmin.f32 %v756, 6.0
        %v789 = vmin.f32 %v757, 6.0
        %v790 = vmin.f32 %v758, 6.0
        %v791 = vmin.f32 %v759, 6.0
        %v792 = vmin.f32 %v760, 6.0
        %v793 = vmin.f32 %v761, 6.0
        %v794 = vmin.f32 %v762, 6.0
        %v795 = vmin.f32 %v763, 6.0
        %v796 = vmin.f32 %v764, 6.0
        %v797 = vmin.f32 %v765, 6.0
        %v798 = vmin.f32 %v766, 6.0
        %v799 = vmul.f32 %v577, %v767
        %v800 = vmul.f32 %v580, %v768
        %v801 = vmul.f32 %v585, %v769
        %v802 = vmul.f32 %v588, %v770
        %v803 = vmul.f32 %v593, %v771
        %v804 = vmul.f32 %v596, %v772
        %v805 = vmul.f32 %v601, %v773
        %v806 = vmul.f32 %v604, %v774
        %v807 = vmul.f32 %v609, %v775
        %v808 = vmul.f32 %v612, %v776
        %v809 = vmul.f32 %v617, %v777
        %v810 = vmul.f32 %v620, %v778
        %v811 = vmul.f32 %v625, %v779
        %v812 = vmul.f32 %v628, %v780
        %v813 = vmul.f32 %v633, %v781
        %v814 = vmul.f32 %v636, %v782
        %v815 = vmul.f32 %v641, %v783
        %v816 = vmul.f32 %v644, %v784
        %v817 = vmul.f32 %v649, %v785
        %v818 = vmul.f32 %v652, %v786
        %v819 = vmul.f32 %v657, %v787
        %v820 = vmul.f32 %v660, %v788
        %v821 = vmul.f32 %v665, %v789
        %v822 = vmul.f32 %v668, %v790
        %v823 = vmul.f32 %v673, %v791
        %v824 = vmul.f32 %v676, %v792
        %v825 = vmul.f32 %v681, %v793
        %v826 = vmul.f32 %v684, %v794
        %v827 = vmul.f32 %v689, %v795
        %v828 = vmul.f32 %v692, %v796
        %v829 = vmul.f32 %v697, %v797
        %v830 = vmul.f32 %v700, %v798
        %v831 = vmul.f32 %v799, 0.16666667
        %v832 = vmul.f32 %v800, 0.16666667
        %v833 = vmul.f32 %v801, 0.16666667
        %v834 = vmul.f32 %v802, 0.16666667
        %v835 = vmul.f32 %v803, 0.16666667
        %v836 = vmul.f32 %v804, 0.16666667
        %v837 = vmul.f32 %v805, 0.16666667
        %v838 = vmul.f32 %v806, 0.16666667
        %v839 = vmul.f32 %v807, 0.16666667
        %v840 = vmul.f32 %v808, 0.16666667
        %v841 = vmul.f32 %v809, 0.16666667
        %v842 = vmul.f32 %v810, 0.16666667
        %v843 = vmul.f32 %v811, 0.16666667
        %v844 = vmul.f32 %v812, 0.16666667
        %v845 = vmul.f32 %v813, 0.16666667
        %v846 = vmul.f32 %v814, 0.16666667
        %v847 = vmul.f32 %v815, 0.16666667
        %v848 = vmul.f32 %v816, 0.16666667
        %v849 = vmul.f32 %v817, 0.16666667
        %v850 = vmul.f32 %v818, 0.16666667
        %v851 = vmul.f32 %v819, 0.16666667
        %v852 = vmul.f32 %v820, 0.16666667
        %v853 = vmul.f32 %v821, 0.16666667
        %v854 = vmul.f32 %v822, 0.16666667
        %v855 = vmul.f32 %v823, 0.16666667
        %v856 = vmul.f32 %v824, 0.16666667
        %v857 = vmul.f32 %v825, 0.16666667
        %v858 = vmul.f32 %v826, 0.16666667
        %v859 = vmul.f32 %v827, 0.16666667
        %v860 = vmul.f32 %v828, 0.16666667
        %v861 = vmul.f32 %v829, 0.16666667
        %v862 = vmul.f32 %v830, 0.16666667
        %863 = vst [vmem:[#allocation2] sm:$0xff] 0.0
        %864 = vst [vmem:[#allocation2 + $0x8] sm:$0xff] 0.0
        %865 = vst [vmem:[#allocation2 + $0x10] sm:$0x3] 0.0
        %866 = vst [vmem:[#allocation2 + $0x18] sm:$0xff] 0.0
        %867 = vst [vmem:[#allocation2 + $0x20] sm:$0xff] 0.0
        %868 = vst [vmem:[#allocation2 + $0x28] sm:$0x3] 0.0
        %869 = vst [vmem:[#allocation2 + $0x30] sm:$0xff] 0.0
        %870 = vst [vmem:[#allocation2 + $0x38] sm:$0xff] 0.0
        %871 = vst [vmem:[#allocation2 + $0x40] sm:$0x3] 0.0
        %872 = vst [vmem:[#allocation2 + $0x48] sm:$0xff] 0.0
        %873 = vst [vmem:[#allocation2 + $0x50] sm:$0xff] 0.0
        %874 = vst [vmem:[#allocation2 + $0x58] sm:$0x3] 0.0
        %875 = vst [vmem:[#allocation2 + $0x60] sm:$0xff] 0.0
        %876 = vst [vmem:[#allocation2 + $0x68] sm:$0xff] 0.0
        %877 = vst [vmem:[#allocation2 + $0x70] sm:$0x3] 0.0
        %878 = vst [vmem:[#allocation2 + $0x78] sm:$0xff] 0.0
        %879 = vst [vmem:[#allocation2 + $0x80] sm:$0xff] 0.0
        %880 = vst [vmem:[#allocation2 + $0x88] sm:$0x3] 0.0
        %881 = vst [vmem:[#allocation2 + $0x90] sm:$0xff] 0.0
        %882 = vst [vmem:[#allocation2 + $0x98] sm:$0xff] 0.0
        %883 = vst [vmem:[#allocation2 + $0xa0] sm:$0x3] 0.0
        %884 = vst [vmem:[#allocation2 + $0xa8] sm:$0xff] 0.0
        %885 = vst [vmem:[#allocation2 + $0xb0] sm:$0xff] 0.0
        %886 = vst [vmem:[#allocation2 + $0xb8] sm:$0x3] 0.0
        %887 = vst [vmem:[#allocation2 + $0xc0] sm:$0xff] 0.0
        %888 = vst [vmem:[#allocation2 + $0xc8] sm:$0xff] 0.0
        %889 = vst [vmem:[#allocation2 + $0xd0] sm:$0x3] 0.0
        %890 = vst [vmem:[#allocation2 + $0xd8] sm:$0xff] 0.0
        %891 = vst [vmem:[#allocation2 + $0xe0] sm:$0xff] 0.0
        %892 = vst [vmem:[#allocation2 + $0xe8] sm:$0x3] 0.0
        %893 = vst [vmem:[#allocation2 + $0xf0] sm:$0xff] 0.0
        %894 = vst [vmem:[#allocation2 + $0xf8] sm:$0xff] 0.0
        %895 = vst [vmem:[#allocation2 + $0x100] sm:$0x3] 0.0
        %896 = vst [vmem:[#allocation2 + $0x108] sm:$0xff] 0.0
        %897 = vst [vmem:[#allocation2 + $0x110] sm:$0xff] 0.0
        %898 = vst [vmem:[#allocation2 + $0x118] sm:$0x3] 0.0
        %899 = vst [vmem:[#allocation2 + $0x120] sm:$0xff] 0.0
        %900 = vst [vmem:[#allocation2 + $0x128] sm:$0xff] 0.0
        %901 = vst [vmem:[#allocation2 + $0x130] sm:$0x3] 0.0
        %902 = vst [vmem:[#allocation2 + $0x138] sm:$0xff] 0.0
        %903 = vst [vmem:[#allocation2 + $0x140] sm:$0xff] 0.0
        %904 = vst [vmem:[#allocation2 + $0x148] sm:$0x3] 0.0
        %905 = vst [vmem:[#allocation2 + $0x150] sm:$0xff] 0.0
        %906 = vst [vmem:[#allocation2 + $0x158] sm:$0xff] 0.0
        %907 = vst [vmem:[#allocation2 + $0x160] sm:$0x3] 0.0
        %908 = vst [vmem:[#allocation2 + $0x168] sm:$0xff] 0.0
        %909 = vst [vmem:[#allocation2 + $0x170] sm:$0xff] 0.0
        %910 = vst [vmem:[#allocation2 + $0x178] sm:$0x3] 0.0
        %911 = vst [vmem:[#allocation2 + $0x180] sm:$0xff] 0.0
        %912 = vst [vmem:[#allocation2 + $0x188] sm:$0xff] 0.0
        %913 = vst [vmem:[#allocation2 + $0x190] sm:$0x3] 0.0
        %914 = vst [vmem:[#allocation2 + $0x198] sm:$0xff] 0.0
        %915 = vst [vmem:[#allocation2 + $0x1a0] sm:$0xff] 0.0
        %916 = vst [vmem:[#allocation2 + $0x1a8] sm:$0x3] 0.0
        %s917 = scalar_lea.vmem [#allocation2], 24
        %918 = vst [vmem:[%s917 + $0x1] sm:$0xff] %v831
        %919 = vst [vmem:[%s917 + $0x9] sm:$0xff] %v832
        %920 = vst [vmem:[%s917 + $0x19] sm:$0xff] %v833
        %921 = vst [vmem:[%s917 + $0x21] sm:$0xff] %v834
        %922 = vst [vmem:[%s917 + $0x31] sm:$0xff] %v835
        %923 = vst [vmem:[%s917 + $0x39] sm:$0xff] %v836
        %924 = vst [vmem:[%s917 + $0x49] sm:$0xff] %v837
        %925 = vst [vmem:[%s917 + $0x51] sm:$0xff] %v838
        %926 = vst [vmem:[%s917 + $0x61] sm:$0xff] %v839
        %927 = vst [vmem:[%s917 + $0x69] sm:$0xff] %v840
        %928 = vst [vmem:[%s917 + $0x79] sm:$0xff] %v841
        %929 = vst [vmem:[%s917 + $0x81] sm:$0xff] %v842
        %930 = vst [vmem:[%s917 + $0x91] sm:$0xff] %v843
        %931 = vst [vmem:[%s917 + $0x99] sm:$0xff] %v844
        %932 = vst [vmem:[%s917 + $0xa9] sm:$0xff] %v845
        %933 = vst [vmem:[%s917 + $0xb1] sm:$0xff] %v846
        %934 = vst [vmem:[%s917 + $0xc1] sm:$0xff] %v847
        %935 = vst [vmem:[%s917 + $0xc9] sm:$0xff] %v848
        %936 = vst [vmem:[%s917 + $0xd9] sm:$0xff] %v849
        %937 = vst [vmem:[%s917 + $0xe1] sm:$0xff] %v850
        %938 = vst [vmem:[%s917 + $0xf1] sm:$0xff] %v851
        %939 = vst [vmem:[%s917 + $0xf9] sm:$0xff] %v852
        %940 = vst [vmem:[%s917 + $0x109] sm:$0xff] %v853
        %941 = vst [vmem:[%s917 + $0x111] sm:$0xff] %v854
        %942 = vst [vmem:[%s917 + $0x121] sm:$0xff] %v855
        %943 = vst [vmem:[%s917 + $0x129] sm:$0xff] %v856
        %944 = vst [vmem:[%s917 + $0x139] sm:$0xff] %v857
        %945 = vst [vmem:[%s917 + $0x141] sm:$0xff] %v858
        %946 = vst [vmem:[%s917 + $0x151] sm:$0xff] %v859
        %947 = vst [vmem:[%s917 + $0x159] sm:$0xff] %v860
        %948 = vst [vmem:[%s917 + $0x169] sm:$0xff] %v861
        %949 = vst [vmem:[%s917 + $0x171] sm:$0xff] %v862
        %v950 = vld [vmem:[%s3] sm:$0xff]
        %v951 = vld [vmem:[%s3 + $0x8] sm:$0xff]
        %v952 = vld [vmem:[#allocation2] sm:$0xff]
        %v953 = vld [vmem:[#allocation2 + $0x8] sm:$0xff]
        %v954 = vld [vmem:[#allocation2 + $0x18] sm:$0xff]
        %v955 = vld [vmem:[#allocation2 + $0x20] sm:$0xff]
        %v956 = vld [vmem:[#allocation2 + $0x30] sm:$0xff]
        %v957 = vld [vmem:[#allocation2 + $0x38] sm:$0xff]
        %v958 = vld [vmem:[#allocation2 + $0x48] sm:$0xff]
        %v959 = vld [vmem:[#allocation2 + $0x50] sm:$0xff]
        %v960 = vld [vmem:[#allocation2 + $0x60] sm:$0xff]
        %v961 = vld [vmem:[#allocation2 + $0x68] sm:$0xff]
        %v962 = vld [vmem:[#allocation2 + $0x78] sm:$0xff]
        %v963 = vld [vmem:[#allocation2 + $0x80] sm:$0xff]
        %v964 = vld [vmem:[#allocation2 + $0x90] sm:$0xff]
        %v965 = vld [vmem:[#allocation2 + $0x98] sm:$0xff]
        %v966 = vld [vmem:[#allocation2 + $0xa8] sm:$0xff]
        %v967 = vld [vmem:[#allocation2 + $0xb0] sm:$0xff]
        %v968 = vld [vmem:[#allocation2 + $0xc0] sm:$0xff]
        %v969 = vld [vmem:[#allocation2 + $0xc8] sm:$0xff]
        %v970 = vld [vmem:[#allocation2 + $0xd8] sm:$0xff]
        %v971 = vld [vmem:[#allocation2 + $0xe0] sm:$0xff]
        %v972 = vld [vmem:[#allocation2 + $0xf0] sm:$0xff]
        %v973 = vld [vmem:[#allocation2 + $0xf8] sm:$0xff]
        %v974 = vld [vmem:[#allocation2 + $0x108] sm:$0xff]
        %v975 = vld [vmem:[#allocation2 + $0x110] sm:$0xff]
        %v976 = vld [vmem:[#allocation2 + $0x120] sm:$0xff]
        %v977 = vld [vmem:[#allocation2 + $0x128] sm:$0xff]
        %v978 = vld [vmem:[#allocation2 + $0x138] sm:$0xff]
        %v979 = vld [vmem:[#allocation2 + $0x140] sm:$0xff]
        %v980 = vld [vmem:[#allocation2 + $0x150] sm:$0xff]
        %v981 = vld [vmem:[#allocation2 + $0x158] sm:$0xff]
        %v982 = vld [vmem:[#allocation2 + $0x168] sm:$0xff]
        %v983 = vld [vmem:[#allocation2 + $0x170] sm:$0xff]
        %v984 = vld [vmem:[#allocation2 + $0x180] sm:$0xff]
        %v985 = vld [vmem:[#allocation2 + $0x188] sm:$0xff]
        %v986 = vld [vmem:[#allocation2 + $0x198] sm:$0xff]
        %v987 = vld [vmem:[#allocation2 + $0x1a0] sm:$0xff]
        %v988 = vlaneseq
        %v989 = vshrl.u32 %v988, 7
        %v990 = vsub.s32 0, %v989
        %v991 = vrot.slane %v950, %v990
        %v992 = vmul.f32 %v952, %v991
        %v993 = vmul.f32 %v953, %v991
        %v994 = vmul.f32 %v954, %v991
        %v995 = vmul.f32 %v955, %v991
        %v996 = vmul.f32 %v956, %v991
        %v997 = vmul.f32 %v957, %v991
        %v998 = vmul.f32 %v958, %v991
        %v999 = vmul.f32 %v959, %v991
        %v1000 = vmul.f32 %v960, %v991
        %v1001 = vmul.f32 %v961, %v991
        %v1002 = vmul.f32 %v962, %v991
        %v1003 = vmul.f32 %v963, %v991
        %v1004 = vmul.f32 %v964, %v991
        %v1005 = vmul.f32 %v965, %v991
        %v1006 = vmul.f32 %v966, %v991
        %v1007 = vmul.f32 %v967, %v991
        %v1008 = vmul.f32 %v968, %v991
        %v1009 = vmul.f32 %v969, %v991
        %v1010 = vmul.f32 %v970, %v991
        %v1011 = vmul.f32 %v971, %v991
        %v1012 = vmul.f32 %v972, %v991
        %v1013 = vmul.f32 %v973, %v991
        %v1014 = vmul.f32 %v974, %v991
        %v1015 = vmul.f32 %v975, %v991
        %v1016 = vmul.f32 %v976, %v991
        %v1017 = vmul.f32 %v977, %v991
        %v1018 = vmul.f32 %v978, %v991
        %v1019 = vmul.f32 %v979, %v991
        %v1020 = vmul.f32 %v980, %v991
        %v1021 = vmul.f32 %v981, %v991
        %v1022 = vmul.f32 %v982, %v991
        %v1023 = vmul.f32 %v983, %v991
        %v1024 = vadd.f32 %v992, 0.0
        %v1025 = vadd.f32 %v993, 0.0
        %v1026 = vadd.f32 %v994, 0.0
        %v1027 = vadd.f32 %v995, 0.0
        %v1028 = vadd.f32 %v996, 0.0
        %v1029 = vadd.f32 %v997, 0.0
        %v1030 = vadd.f32 %v998, 0.0
        %v1031 = vadd.f32 %v999, 0.0
        %v1032 = vadd.f32 %v1000, 0.0
        %v1033 = vadd.f32 %v1001, 0.0
        %v1034 = vadd.f32 %v1002, 0.0
        %v1035 = vadd.f32 %v1003, 0.0
        %v1036 = vadd.f32 %v1004, 0.0
        %v1037 = vadd.f32 %v1005, 0.0
        %v1038 = vadd.f32 %v1006, 0.0
        %v1039 = vadd.f32 %v1007, 0.0
        %v1040 = vadd.f32 %v1008, 0.0
        %v1041 = vadd.f32 %v1009, 0.0
        %v1042 = vadd.f32 %v1010, 0.0
        %v1043 = vadd.f32 %v1011, 0.0
        %v1044 = vadd.f32 %v1012, 0.0
        %v1045 = vadd.f32 %v1013, 0.0
        %v1046 = vadd.f32 %v1014, 0.0
        %v1047 = vadd.f32 %v1015, 0.0
        %v1048 = vadd.f32 %v1016, 0.0
        %v1049 = vadd.f32 %v1017, 0.0
        %v1050 = vadd.f32 %v1018, 0.0
        %v1051 = vadd.f32 %v1019, 0.0
        %v1052 = vadd.f32 %v1020, 0.0
        %v1053 = vadd.f32 %v1021, 0.0
        %v1054 = vadd.f32 %v1022, 0.0
        %v1055 = vadd.f32 %v1023, 0.0
        %v1056 = vlaneseq
        %v1057 = vshrl.u32 %v1056, 7
        %v1058 = vsub.s32 3, %v1057
        %v1059 = vrot.slane %v950, %v1058
        %v1060 = vmul.f32 %v954, %v1059
        %v1061 = vmul.f32 %v955, %v1059
        %v1062 = vmul.f32 %v956, %v1059
        %v1063 = vmul.f32 %v957, %v1059
        %v1064 = vmul.f32 %v958, %v1059
        %v1065 = vmul.f32 %v959, %v1059
        %v1066 = vmul.f32 %v960, %v1059
        %v1067 = vmul.f32 %v961, %v1059
        %v1068 = vmul.f32 %v962, %v1059
        %v1069 = vmul.f32 %v963, %v1059
        %v1070 = vmul.f32 %v964, %v1059
        %v1071 = vmul.f32 %v965, %v1059
        %v1072 = vmul.f32 %v966, %v1059
        %v1073 = vmul.f32 %v967, %v1059
        %v1074 = vmul.f32 %v968, %v1059
        %v1075 = vmul.f32 %v969, %v1059
        %v1076 = vmul.f32 %v970, %v1059
        %v1077 = vmul.f32 %v971, %v1059
        %v1078 = vmul.f32 %v972, %v1059
        %v1079 = vmul.f32 %v973, %v1059
        %v1080 = vmul.f32 %v974, %v1059
        %v1081 = vmul.f32 %v975, %v1059
        %v1082 = vmul.f32 %v976, %v1059
        %v1083 = vmul.f32 %v977, %v1059
        %v1084 = vmul.f32 %v978, %v1059
        %v1085 = vmul.f32 %v979, %v1059
        %v1086 = vmul.f32 %v980, %v1059
        %v1087 = vmul.f32 %v981, %v1059
        %v1088 = vmul.f32 %v982, %v1059
        %v1089 = vmul.f32 %v983, %v1059
        %v1090 = vmul.f32 %v984, %v1059
        %v1091 = vmul.f32 %v985, %v1059
        %v1092 = vadd.f32 %v1024, %v1060
        %v1093 = vadd.f32 %v1025, %v1061
        %v1094 = vadd.f32 %v1026, %v1062
        %v1095 = vadd.f32 %v1027, %v1063
        %v1096 = vadd.f32 %v1028, %v1064
        %v1097 = vadd.f32 %v1029, %v1065
        %v1098 = vadd.f32 %v1030, %v1066
        %v1099 = vadd.f32 %v1031, %v1067
        %v1100 = vadd.f32 %v1032, %v1068
        %v1101 = vadd.f32 %v1033, %v1069
        %v1102 = vadd.f32 %v1034, %v1070
        %v1103 = vadd.f32 %v1035, %v1071
        %v1104 = vadd.f32 %v1036, %v1072
        %v1105 = vadd.f32 %v1037, %v1073
        %v1106 = vadd.f32 %v1038, %v1074
        %v1107 = vadd.f32 %v1039, %v1075
        %v1108 = vadd.f32 %v1040, %v1076
        %v1109 = vadd.f32 %v1041, %v1077
        %v1110 = vadd.f32 %v1042, %v1078
        %v1111 = vadd.f32 %v1043, %v1079
        %v1112 = vadd.f32 %v1044, %v1080
        %v1113 = vadd.f32 %v1045, %v1081
        %v1114 = vadd.f32 %v1046, %v1082
        %v1115 = vadd.f32 %v1047, %v1083
        %v1116 = vadd.f32 %v1048, %v1084
        %v1117 = vadd.f32 %v1049, %v1085
        %v1118 = vadd.f32 %v1050, %v1086
        %v1119 = vadd.f32 %v1051, %v1087
        %v1120 = vadd.f32 %v1052, %v1088
        %v1121 = vadd.f32 %v1053, %v1089
        %v1122 = vadd.f32 %v1054, %v1090
        %v1123 = vadd.f32 %v1055, %v1091
        %v1124 = vlaneseq
        %v1125 = vshrl.u32 %v1124, 7
        %v1126 = vsub.s32 6, %v1125
        %v1127 = vrot.slane %v950, %v1126
        %v1128 = vmul.f32 %v956, %v1127
        %v1129 = vmul.f32 %v957, %v1127
        %v1130 = vmul.f32 %v958, %v1127
        %v1131 = vmul.f32 %v959, %v1127
        %v1132 = vmul.f32 %v960, %v1127
        %v1133 = vmul.f32 %v961, %v1127
        %v1134 = vmul.f32 %v962, %v1127
        %v1135 = vmul.f32 %v963, %v1127
        %v1136 = vmul.f32 %v964, %v1127
        %v1137 = vmul.f32 %v965, %v1127
        %v1138 = vmul.f32 %v966, %v1127
        %v1139 = vmul.f32 %v967, %v1127
        %v1140 = vmul.f32 %v968, %v1127
        %v1141 = vmul.f32 %v969, %v1127
        %v1142 = vmul.f32 %v970, %v1127
        %v1143 = vmul.f32 %v971, %v1127
        %v1144 = vmul.f32 %v972, %v1127
        %v1145 = vmul.f32 %v973, %v1127
        %v1146 = vmul.f32 %v974, %v1127
        %v1147 = vmul.f32 %v975, %v1127
        %v1148 = vmul.f32 %v976, %v1127
        %v1149 = vmul.f32 %v977, %v1127
        %v1150 = vmul.f32 %v978, %v1127
        %v1151 = vmul.f32 %v979, %v1127
        %v1152 = vmul.f32 %v980, %v1127
        %v1153 = vmul.f32 %v981, %v1127
        %v1154 = vmul.f32 %v982, %v1127
        %v1155 = vmul.f32 %v983, %v1127
        %v1156 = vmul.f32 %v984, %v1127
        %v1157 = vmul.f32 %v985, %v1127
        %v1158 = vmul.f32 %v986, %v1127
        %v1159 = vmul.f32 %v987, %v1127
        %v1160 = vadd.f32 %v1092, %v1128
        %v1161 = vadd.f32 %v1093, %v1129
        %v1162 = vadd.f32 %v1094, %v1130
        %v1163 = vadd.f32 %v1095, %v1131
        %v1164 = vadd.f32 %v1096, %v1132
        %v1165 = vadd.f32 %v1097, %v1133
        %v1166 = vadd.f32 %v1098, %v1134
        %v1167 = vadd.f32 %v1099, %v1135
        %v1168 = vadd.f32 %v1100, %v1136
        %v1169 = vadd.f32 %v1101, %v1137
        %v1170 = vadd.f32 %v1102, %v1138
        %v1171 = vadd.f32 %v1103, %v1139
        %v1172 = vadd.f32 %v1104, %v1140
        %v1173 = vadd.f32 %v1105, %v1141
        %v1174 = vadd.f32 %v1106, %v1142
        %v1175 = vadd.f32 %v1107, %v1143
        %v1176 = vadd.f32 %v1108, %v1144
        %v1177 = vadd.f32 %v1109, %v1145
        %v1178 = vadd.f32 %v1110, %v1146
        %v1179 = vadd.f32 %v1111, %v1147
        %v1180 = vadd.f32 %v1112, %v1148
        %v1181 = vadd.f32 %v1113, %v1149
        %v1182 = vadd.f32 %v1114, %v1150
        %v1183 = vadd.f32 %v1115, %v1151
        %v1184 = vadd.f32 %v1116, %v1152
        %v1185 = vadd.f32 %v1117, %v1153
        %v1186 = vadd.f32 %v1118, %v1154
        %v1187 = vadd.f32 %v1119, %v1155
        %v1188 = vadd.f32 %v1120, %v1156
        %v1189 = vadd.f32 %v1121, %v1157
        %v1190 = vadd.f32 %v1122, %v1158
        %v1191 = vadd.f32 %v1123, %v1159
        %v1192 = vld [vmem:[#allocation2 + $0x1] sm:$0xff]
        %v1193 = vld [vmem:[#allocation2 + $0x9] sm:$0xff]
        %v1194 = vld [vmem:[#allocation2 + $0x19] sm:$0xff]
        %v1195 = vld [vmem:[#allocation2 + $0x21] sm:$0xff]
        %v1196 = vld [vmem:[#allocation2 + $0x31] sm:$0xff]
        %v1197 = vld [vmem:[#allocation2 + $0x39] sm:$0xff]
        %v1198 = vld [vmem:[#allocation2 + $0x49] sm:$0xff]
        %v1199 = vld [vmem:[#allocation2 + $0x51] sm:$0xff]
        %v1200 = vld [vmem:[#allocation2 + $0x61] sm:$0xff]
        %v1201 = vld [vmem:[#allocation2 + $0x69] sm:$0xff]
        %v1202 = vld [vmem:[#allocation2 + $0x79] sm:$0xff]
        %v1203 = vld [vmem:[#allocation2 + $0x81] sm:$0xff]
        %v1204 = vld [vmem:[#allocation2 + $0x91] sm:$0xff]
        %v1205 = vld [vmem:[#allocation2 + $0x99] sm:$0xff]
        %v1206 = vld [vmem:[#allocation2 + $0xa9] sm:$0xff]
        %v1207 = vld [vmem:[#allocation2 + $0xb1] sm:$0xff]
        %v1208 = vld [vmem:[#allocation2 + $0xc1] sm:$0xff]
        %v1209 = vld [vmem:[#allocation2 + $0xc9] sm:$0xff]
        %v1210 = vld [vmem:[#allocation2 + $0xd9] sm:$0xff]
        %v1211 = vld [vmem:[#allocation2 + $0xe1] sm:$0xff]
        %v1212 = vld [vmem:[#allocation2 + $0xf1] sm:$0xff]
        %v1213 = vld [vmem:[#allocation2 + $0xf9] sm:$0xff]
        %v1214 = vld [vmem:[#allocation2 + $0x109] sm:$0xff]
        %v1215 = vld [vmem:[#allocation2 + $0x111] sm:$0xff]
        %v1216 = vld [vmem:[#allocation2 + $0x121] sm:$0xff]
        %v1217 = vld [vmem:[#allocation2 + $0x129] sm:$0xff]
        %v1218 = vld [vmem:[#allocation2 + $0x139] sm:$0xff]
        %v1219 = vld [vmem:[#allocation2 + $0x141] sm:$0xff]
        %v1220 = vld [vmem:[#allocation2 + $0x151] sm:$0xff]
        %v1221 = vld [vmem:[#allocation2 + $0x159] sm:$0xff]
        %v1222 = vld [vmem:[#allocation2 + $0x169] sm:$0xff]
        %v1223 = vld [vmem:[#allocation2 + $0x171] sm:$0xff]
        %v1224 = vld [vmem:[#allocation2 + $0x181] sm:$0xff]
        %v1225 = vld [vmem:[#allocation2 + $0x189] sm:$0xff]
        %v1226 = vld [vmem:[#allocation2 + $0x199] sm:$0xff]
        %v1227 = vld [vmem:[#allocation2 + $0x1a1] sm:$0xff]
        %v1228 = vlaneseq
        %v1229 = vshrl.u32 %v1228, 7
        %v1230 = vsub.s32 1, %v1229
        %v1231 = vrot.slane %v950, %v1230
        %v1232 = vmul.f32 %v1192, %v1231
        %v1233 = vmul.f32 %v1193, %v1231
        %v1234 = vmul.f32 %v1194, %v1231
        %v1235 = vmul.f32 %v1195, %v1231
        %v1236 = vmul.f32 %v1196, %v1231
        %v1237 = vmul.f32 %v1197, %v1231
        %v1238 = vmul.f32 %v1198, %v1231
        %v1239 = vmul.f32 %v1199, %v1231
        %v1240 = vmul.f32 %v1200, %v1231
        %v1241 = vmul.f32 %v1201, %v1231
        %v1242 = vmul.f32 %v1202, %v1231
        %v1243 = vmul.f32 %v1203, %v1231
        %v1244 = vmul.f32 %v1204, %v1231
        %v1245 = vmul.f32 %v1205, %v1231
        %v1246 = vmul.f32 %v1206, %v1231
        %v1247 = vmul.f32 %v1207, %v1231
        %v1248 = vmul.f32 %v1208, %v1231
        %v1249 = vmul.f32 %v1209, %v1231
        %v1250 = vmul.f32 %v1210, %v1231
        %v1251 = vmul.f32 %v1211, %v1231
        %v1252 = vmul.f32 %v1212, %v1231
        %v1253 = vmul.f32 %v1213, %v1231
        %v1254 = vmul.f32 %v1214, %v1231
        %v1255 = vmul.f32 %v1215, %v1231
        %v1256 = vmul.f32 %v1216, %v1231
        %v1257 = vmul.f32 %v1217, %v1231
        %v1258 = vmul.f32 %v1218, %v1231
        %v1259 = vmul.f32 %v1219, %v1231
        %v1260 = vmul.f32 %v1220, %v1231
        %v1261 = vmul.f32 %v1221, %v1231
        %v1262 = vmul.f32 %v1222, %v1231
        %v1263 = vmul.f32 %v1223, %v1231
        %v1264 = vadd.f32 %v1160, %v1232
        %v1265 = vadd.f32 %v1161, %v1233
        %v1266 = vadd.f32 %v1162, %v1234
        %v1267 = vadd.f32 %v1163, %v1235
        %v1268 = vadd.f32 %v1164, %v1236
        %v1269 = vadd.f32 %v1165, %v1237
        %v1270 = vadd.f32 %v1166, %v1238
        %v1271 = vadd.f32 %v1167, %v1239
        %v1272 = vadd.f32 %v1168, %v1240
        %v1273 = vadd.f32 %v1169, %v1241
        %v1274 = vadd.f32 %v1170, %v1242
        %v1275 = vadd.f32 %v1171, %v1243
        %v1276 = vadd.f32 %v1172, %v1244
        %v1277 = vadd.f32 %v1173, %v1245
        %v1278 = vadd.f32 %v1174, %v1246
        %v1279 = vadd.f32 %v1175, %v1247
        %v1280 = vadd.f32 %v1176, %v1248
        %v1281 = vadd.f32 %v1177, %v1249
        %v1282 = vadd.f32 %v1178, %v1250
        %v1283 = vadd.f32 %v1179, %v1251
        %v1284 = vadd.f32 %v1180, %v1252
        %v1285 = vadd.f32 %v1181, %v1253
        %v1286 = vadd.f32 %v1182, %v1254
        %v1287 = vadd.f32 %v1183, %v1255
        %v1288 = vadd.f32 %v1184, %v1256
        %v1289 = vadd.f32 %v1185, %v1257
        %v1290 = vadd.f32 %v1186, %v1258
        %v1291 = vadd.f32 %v1187, %v1259
        %v1292 = vadd.f32 %v1188, %v1260
        %v1293 = vadd.f32 %v1189, %v1261
        %v1294 = vadd.f32 %v1190, %v1262
        %v1295 = vadd.f32 %v1191, %v1263
        %v1296 = vlaneseq
        %v1297 = vshrl.u32 %v1296, 7
        %v1298 = vsub.s32 4, %v1297
        %v1299 = vrot.slane %v950, %v1298
        %v1300 = vmul.f32 %v1194, %v1299
        %v1301 = vmul.f32 %v1195, %v1299
        %v1302 = vmul.f32 %v1196, %v1299
        %v1303 = vmul.f32 %v1197, %v1299
        %v1304 = vmul.f32 %v1198, %v1299
        %v1305 = vmul.f32 %v1199, %v1299
        %v1306 = vmul.f32 %v1200, %v1299
        %v1307 = vmul.f32 %v1201, %v1299
        %v1308 = vmul.f32 %v1202, %v1299
        %v1309 = vmul.f32 %v1203, %v1299
        %v1310 = vmul.f32 %v1204, %v1299
        %v1311 = vmul.f32 %v1205, %v1299
        %v1312 = vmul.f32 %v1206, %v1299
        %v1313 = vmul.f32 %v1207, %v1299
        %v1314 = vmul.f32 %v1208, %v1299
        %v1315 = vmul.f32 %v1209, %v1299
        %v1316 = vmul.f32 %v1210, %v1299
        %v1317 = vmul.f32 %v1211, %v1299
        %v1318 = vmul.f32 %v1212, %v1299
        %v1319 = vmul.f32 %v1213, %v1299
        %v1320 = vmul.f32 %v1214, %v1299
        %v1321 = vmul.f32 %v1215, %v1299
        %v1322 = vmul.f32 %v1216, %v1299
        %v1323 = vmul.f32 %v1217, %v1299
        %v1324 = vmul.f32 %v1218, %v1299
        %v1325 = vmul.f32 %v1219, %v1299
        %v1326 = vmul.f32 %v1220, %v1299
        %v1327 = vmul.f32 %v1221, %v1299
        %v1328 = vmul.f32 %v1222, %v1299
        %v1329 = vmul.f32 %v1223, %v1299
        %v1330 = vmul.f32 %v1224, %v1299
        %v1331 = vmul.f32 %v1225, %v1299
        %v1332 = vadd.f32 %v1264, %v1300
        %v1333 = vadd.f32 %v1265, %v1301
        %v1334 = vadd.f32 %v1266, %v1302
        %v1335 = vadd.f32 %v1267, %v1303
        %v1336 = vadd.f32 %v1268, %v1304
        %v1337 = vadd.f32 %v1269, %v1305
        %v1338 = vadd.f32 %v1270, %v1306
        %v1339 = vadd.f32 %v1271, %v1307
        %v1340 = vadd.f32 %v1272, %v1308
        %v1341 = vadd.f32 %v1273, %v1309
        %v1342 = vadd.f32 %v1274, %v1310
        %v1343 = vadd.f32 %v1275, %v1311
        %v1344 = vadd.f32 %v1276, %v1312
        %v1345 = vadd.f32 %v1277, %v1313
        %v1346 = vadd.f32 %v1278, %v1314
        %v1347 = vadd.f32 %v1279, %v1315
        %v1348 = vadd.f32 %v1280, %v1316
        %v1349 = vadd.f32 %v1281, %v1317
        %v1350 = vadd.f32 %v1282, %v1318
        %v1351 = vadd.f32 %v1283, %v1319
        %v1352 = vadd.f32 %v1284, %v1320
        %v1353 = vadd.f32 %v1285, %v1321
        %v1354 = vadd.f32 %v1286, %v1322
        %v1355 = vadd.f32 %v1287, %v1323
        %v1356 = vadd.f32 %v1288, %v1324
        %v1357 = vadd.f32 %v1289, %v1325
        %v1358 = vadd.f32 %v1290, %v1326
        %v1359 = vadd.f32 %v1291, %v1327
        %v1360 = vadd.f32 %v1292, %v1328
        %v1361 = vadd.f32 %v1293, %v1329
        %v1362 = vadd.f32 %v1294, %v1330
        %v1363 = vadd.f32 %v1295, %v1331
        %v1364 = vlaneseq
        %v1365 = vshrl.u32 %v1364, 7
        %v1366 = vsub.s32 7, %v1365
        %v1367 = vrot.slane %v950, %v1366
        %v1368 = vmul.f32 %v1196, %v1367
        %v1369 = vmul.f32 %v1197, %v1367
        %v1370 = vmul.f32 %v1198, %v1367
        %v1371 = vmul.f32 %v1199, %v1367
        %v1372 = vmul.f32 %v1200, %v1367
        %v1373 = vmul.f32 %v1201, %v1367
        %v1374 = vmul.f32 %v1202, %v1367
        %v1375 = vmul.f32 %v1203, %v1367
        %v1376 = vmul.f32 %v1204, %v1367
        %v1377 = vmul.f32 %v1205, %v1367
        %v1378 = vmul.f32 %v1206, %v1367
        %v1379 = vmul.f32 %v1207, %v1367
        %v1380 = vmul.f32 %v1208, %v1367
        %v1381 = vmul.f32 %v1209, %v1367
        %v1382 = vmul.f32 %v1210, %v1367
        %v1383 = vmul.f32 %v1211, %v1367
        %v1384 = vmul.f32 %v1212, %v1367
        %v1385 = vmul.f32 %v1213, %v1367
        %v1386 = vmul.f32 %v1214, %v1367
        %v1387 = vmul.f32 %v1215, %v1367
        %v1388 = vmul.f32 %v1216, %v1367
        %v1389 = vmul.f32 %v1217, %v1367
        %v1390 = vmul.f32 %v1218, %v1367
        %v1391 = vmul.f32 %v1219, %v1367
        %v1392 = vmul.f32 %v1220, %v1367
        %v1393 = vmul.f32 %v1221, %v1367
        %v1394 = vmul.f32 %v1222, %v1367
        %v1395 = vmul.f32 %v1223, %v1367
        %v1396 = vmul.f32 %v1224, %v1367
        %v1397 = vmul.f32 %v1225, %v1367
        %v1398 = vmul.f32 %v1226, %v1367
        %v1399 = vmul.f32 %v1227, %v1367
        %v1400 = vadd.f32 %v1332, %v1368
        %v1401 = vadd.f32 %v1333, %v1369
        %v1402 = vadd.f32 %v1334, %v1370
        %v1403 = vadd.f32 %v1335, %v1371
        %v1404 = vadd.f32 %v1336, %v1372
        %v1405 = vadd.f32 %v1337, %v1373
        %v1406 = vadd.f32 %v1338, %v1374
        %v1407 = vadd.f32 %v1339, %v1375
        %v1408 = vadd.f32 %v1340, %v1376
        %v1409 = vadd.f32 %v1341, %v1377
        %v1410 = vadd.f32 %v1342, %v1378
        %v1411 = vadd.f32 %v1343, %v1379
        %v1412 = vadd.f32 %v1344, %v1380
        %v1413 = vadd.f32 %v1345, %v1381
        %v1414 = vadd.f32 %v1346, %v1382
        %v1415 = vadd.f32 %v1347, %v1383
        %v1416 = vadd.f32 %v1348, %v1384
        %v1417 = vadd.f32 %v1349, %v1385
        %v1418 = vadd.f32 %v1350, %v1386
        %v1419 = vadd.f32 %v1351, %v1387
        %v1420 = vadd.f32 %v1352, %v1388
        %v1421 = vadd.f32 %v1353, %v1389
        %v1422 = vadd.f32 %v1354, %v1390
        %v1423 = vadd.f32 %v1355, %v1391
        %v1424 = vadd.f32 %v1356, %v1392
        %v1425 = vadd.f32 %v1357, %v1393
        %v1426 = vadd.f32 %v1358, %v1394
        %v1427 = vadd.f32 %v1359, %v1395
        %v1428 = vadd.f32 %v1360, %v1396
        %v1429 = vadd.f32 %v1361, %v1397
        %v1430 = vadd.f32 %v1362, %v1398
        %v1431 = vadd.f32 %v1363, %v1399
        %v1432 = vld [vmem:[#allocation2 + $0x2] sm:$0xff]
        %v1433 = vld [vmem:[#allocation2 + $0xa] sm:$0xff]
        %v1434 = vld [vmem:[#allocation2 + $0x1a] sm:$0xff]
        %v1435 = vld [vmem:[#allocation2 + $0x22] sm:$0xff]
        %v1436 = vld [vmem:[#allocation2 + $0x32] sm:$0xff]
        %v1437 = vld [vmem:[#allocation2 + $0x3a] sm:$0xff]
        %v1438 = vld [vmem:[#allocation2 + $0x4a] sm:$0xff]
        %v1439 = vld [vmem:[#allocation2 + $0x52] sm:$0xff]
        %v1440 = vld [vmem:[#allocation2 + $0x62] sm:$0xff]
        %v1441 = vld [vmem:[#allocation2 + $0x6a] sm:$0xff]
        %v1442 = vld [vmem:[#allocation2 + $0x7a] sm:$0xff]
        %v1443 = vld [vmem:[#allocation2 + $0x82] sm:$0xff]
        %v1444 = vld [vmem:[#allocation2 + $0x92] sm:$0xff]
        %v1445 = vld [vmem:[#allocation2 + $0x9a] sm:$0xff]
        %v1446 = vld [vmem:[#allocation2 + $0xaa] sm:$0xff]
        %v1447 = vld [vmem:[#allocation2 + $0xb2] sm:$0xff]
        %v1448 = vld [vmem:[#allocation2 + $0xc2] sm:$0xff]
        %v1449 = vld [vmem:[#allocation2 + $0xca] sm:$0xff]
        %v1450 = vld [vmem:[#allocation2 + $0xda] sm:$0xff]
        %v1451 = vld [vmem:[#allocation2 + $0xe2] sm:$0xff]
        %v1452 = vld [vmem:[#allocation2 + $0xf2] sm:$0xff]
        %v1453 = vld [vmem:[#allocation2 + $0xfa] sm:$0xff]
        %v1454 = vld [vmem:[#allocation2 + $0x10a] sm:$0xff]
        %v1455 = vld [vmem:[#allocation2 + $0x112] sm:$0xff]
        %v1456 = vld [vmem:[#allocation2 + $0x122] sm:$0xff]
        %v1457 = vld [vmem:[#allocation2 + $0x12a] sm:$0xff]
        %v1458 = vld [vmem:[#allocation2 + $0x13a] sm:$0xff]
        %v1459 = vld [vmem:[#allocation2 + $0x142] sm:$0xff]
        %v1460 = vld [vmem:[#allocation2 + $0x152] sm:$0xff]
        %v1461 = vld [vmem:[#allocation2 + $0x15a] sm:$0xff]
        %v1462 = vld [vmem:[#allocation2 + $0x16a] sm:$0xff]
        %v1463 = vld [vmem:[#allocation2 + $0x172] sm:$0xff]
        %v1464 = vld [vmem:[#allocation2 + $0x182] sm:$0xff]
        %v1465 = vld [vmem:[#allocation2 + $0x18a] sm:$0xff]
        %v1466 = vld [vmem:[#allocation2 + $0x19a] sm:$0xff]
        %v1467 = vld [vmem:[#allocation2 + $0x1a2] sm:$0xff]
        %v1468 = vlaneseq
        %v1469 = vshrl.u32 %v1468, 7
        %v1470 = vsub.s32 2, %v1469
        %v1471 = vrot.slane %v950, %v1470
        %v1472 = vmul.f32 %v1432, %v1471
        %v1473 = vmul.f32 %v1433, %v1471
        %v1474 = vmul.f32 %v1434, %v1471
        %v1475 = vmul.f32 %v1435, %v1471
        %v1476 = vmul.f32 %v1436, %v1471
        %v1477 = vmul.f32 %v1437, %v1471
        %v1478 = vmul.f32 %v1438, %v1471
        %v1479 = vmul.f32 %v1439, %v1471
        %v1480 = vmul.f32 %v1440, %v1471
        %v1481 = vmul.f32 %v1441, %v1471
        %v1482 = vmul.f32 %v1442, %v1471
        %v1483 = vmul.f32 %v1443, %v1471
        %v1484 = vmul.f32 %v1444, %v1471
        %v1485 = vmul.f32 %v1445, %v1471
        %v1486 = vmul.f32 %v1446, %v1471
        %v1487 = vmul.f32 %v1447, %v1471
        %v1488 = vmul.f32 %v1448, %v1471
        %v1489 = vmul.f32 %v1449, %v1471
        %v1490 = vmul.f32 %v1450, %v1471
        %v1491 = vmul.f32 %v1451, %v1471
        %v1492 = vmul.f32 %v1452, %v1471
        %v1493 = vmul.f32 %v1453, %v1471
        %v1494 = vmul.f32 %v1454, %v1471
        %v1495 = vmul.f32 %v1455, %v1471
        %v1496 = vmul.f32 %v1456, %v1471
        %v1497 = vmul.f32 %v1457, %v1471
        %v1498 = vmul.f32 %v1458, %v1471
        %v1499 = vmul.f32 %v1459, %v1471
        %v1500 = vmul.f32 %v1460, %v1471
        %v1501 = vmul.f32 %v1461, %v1471
        %v1502 = vmul.f32 %v1462, %v1471
        %v1503 = vmul.f32 %v1463, %v1471
        %v1504 = vadd.f32 %v1400, %v1472
        %v1505 = vadd.f32 %v1401, %v1473
        %v1506 = vadd.f32 %v1402, %v1474
        %v1507 = vadd.f32 %v1403, %v1475
        %v1508 = vadd.f32 %v1404, %v1476
        %v1509 = vadd.f32 %v1405, %v1477
        %v1510 = vadd.f32 %v1406, %v1478
        %v1511 = vadd.f32 %v1407, %v1479
        %v1512 = vadd.f32 %v1408, %v1480
        %v1513 = vadd.f32 %v1409, %v1481
        %v1514 = vadd.f32 %v1410, %v1482
        %v1515 = vadd.f32 %v1411, %v1483
        %v1516 = vadd.f32 %v1412, %v1484
        %v1517 = vadd.f32 %v1413, %v1485
        %v1518 = vadd.f32 %v1414, %v1486
        %v1519 = vadd.f32 %v1415, %v1487
        %v1520 = vadd.f32 %v1416, %v1488
        %v1521 = vadd.f32 %v1417, %v1489
        %v1522 = vadd.f32 %v1418, %v1490
        %v1523 = vadd.f32 %v1419, %v1491
        %v1524 = vadd.f32 %v1420, %v1492
        %v1525 = vadd.f32 %v1421, %v1493
        %v1526 = vadd.f32 %v1422, %v1494
        %v1527 = vadd.f32 %v1423, %v1495
        %v1528 = vadd.f32 %v1424, %v1496
        %v1529 = vadd.f32 %v1425, %v1497
        %v1530 = vadd.f32 %v1426, %v1498
        %v1531 = vadd.f32 %v1427, %v1499
        %v1532 = vadd.f32 %v1428, %v1500
        %v1533 = vadd.f32 %v1429, %v1501
        %v1534 = vadd.f32 %v1430, %v1502
        %v1535 = vadd.f32 %v1431, %v1503
        %v1536 = vlaneseq
        %v1537 = vshrl.u32 %v1536, 7
        %v1538 = vsub.s32 5, %v1537
        %v1539 = vrot.slane %v950, %v1538
        %v1540 = vmul.f32 %v1434, %v1539
        %v1541 = vmul.f32 %v1435, %v1539
        %v1542 = vmul.f32 %v1436, %v1539
        %v1543 = vmul.f32 %v1437, %v1539
        %v1544 = vmul.f32 %v1438, %v1539
        %v1545 = vmul.f32 %v1439, %v1539
        %v1546 = vmul.f32 %v1440, %v1539
        %v1547 = vmul.f32 %v1441, %v1539
        %v1548 = vmul.f32 %v1442, %v1539
        %v1549 = vmul.f32 %v1443, %v1539
        %v1550 = vmul.f32 %v1444, %v1539
        %v1551 = vmul.f32 %v1445, %v1539
        %v1552 = vmul.f32 %v1446, %v1539
        %v1553 = vmul.f32 %v1447, %v1539
        %v1554 = vmul.f32 %v1448, %v1539
        %v1555 = vmul.f32 %v1449, %v1539
        %v1556 = vmul.f32 %v1450, %v1539
        %v1557 = vmul.f32 %v1451, %v1539
        %v1558 = vmul.f32 %v1452, %v1539
        %v1559 = vmul.f32 %v1453, %v1539
        %v1560 = vmul.f32 %v1454, %v1539
        %v1561 = vmul.f32 %v1455, %v1539
        %v1562 = vmul.f32 %v1456, %v1539
        %v1563 = vmul.f32 %v1457, %v1539
        %v1564 = vmul.f32 %v1458, %v1539
        %v1565 = vmul.f32 %v1459, %v1539
        %v1566 = vmul.f32 %v1460, %v1539
        %v1567 = vmul.f32 %v1461, %v1539
        %v1568 = vmul.f32 %v1462, %v1539
        %v1569 = vmul.f32 %v1463, %v1539
        %v1570 = vmul.f32 %v1464, %v1539
        %v1571 = vmul.f32 %v1465, %v1539
        %v1572 = vadd.f32 %v1504, %v1540
        %v1573 = vadd.f32 %v1505, %v1541
        %v1574 = vadd.f32 %v1506, %v1542
        %v1575 = vadd.f32 %v1507, %v1543
        %v1576 = vadd.f32 %v1508, %v1544
        %v1577 = vadd.f32 %v1509, %v1545
        %v1578 = vadd.f32 %v1510, %v1546
        %v1579 = vadd.f32 %v1511, %v1547
        %v1580 = vadd.f32 %v1512, %v1548
        %v1581 = vadd.f32 %v1513, %v1549
        %v1582 = vadd.f32 %v1514, %v1550
        %v1583 = vadd.f32 %v1515, %v1551
        %v1584 = vadd.f32 %v1516, %v1552
        %v1585 = vadd.f32 %v1517, %v1553
        %v1586 = vadd.f32 %v1518, %v1554
        %v1587 = vadd.f32 %v1519, %v1555
        %v1588 = vadd.f32 %v1520, %v1556
        %v1589 = vadd.f32 %v1521, %v1557
        %v1590 = vadd.f32 %v1522, %v1558
        %v1591 = vadd.f32 %v1523, %v1559
        %v1592 = vadd.f32 %v1524, %v1560
        %v1593 = vadd.f32 %v1525, %v1561
        %v1594 = vadd.f32 %v1526, %v1562
        %v1595 = vadd.f32 %v1527, %v1563
        %v1596 = vadd.f32 %v1528, %v1564
        %v1597 = vadd.f32 %v1529, %v1565
        %v1598 = vadd.f32 %v1530, %v1566
        %v1599 = vadd.f32 %v1531, %v1567
        %v1600 = vadd.f32 %v1532, %v1568
        %v1601 = vadd.f32 %v1533, %v1569
        %v1602 = vadd.f32 %v1534, %v1570
        %v1603 = vadd.f32 %v1535, %v1571
        %v1604 = vlaneseq
        %v1605 = vshrl.u32 %v1604, 7
        %v1606 = vsub.s32 0, %v1605
        %v1607 = vrot.slane %v951, %v1606
        %v1608 = vmul.f32 %v1436, %v1607
        %v1609 = vmul.f32 %v1437, %v1607
        %v1610 = vmul.f32 %v1438, %v1607
        %v1611 = vmul.f32 %v1439, %v1607
        %v1612 = vmul.f32 %v1440, %v1607
        %v1613 = vmul.f32 %v1441, %v1607
        %v1614 = vmul.f32 %v1442, %v1607
        %v1615 = vmul.f32 %v1443, %v1607
        %v1616 = vmul.f32 %v1444, %v1607
        %v1617 = vmul.f32 %v1445, %v1607
        %v1618 = vmul.f32 %v1446, %v1607
        %v1619 = vmul.f32 %v1447, %v1607
        %v1620 = vmul.f32 %v1448, %v1607
        %v1621 = vmul.f32 %v1449, %v1607
        %v1622 = vmul.f32 %v1450, %v1607
        %v1623 = vmul.f32 %v1451, %v1607
        %v1624 = vmul.f32 %v1452, %v1607
        %v1625 = vmul.f32 %v1453, %v1607
        %v1626 = vmul.f32 %v1454, %v1607
        %v1627 = vmul.f32 %v1455, %v1607
        %v1628 = vmul.f32 %v1456, %v1607
        %v1629 = vmul.f32 %v1457, %v1607
        %v1630 = vmul.f32 %v1458, %v1607
        %v1631 = vmul.f32 %v1459, %v1607
        %v1632 = vmul.f32 %v1460, %v1607
        %v1633 = vmul.f32 %v1461, %v1607
        %v1634 = vmul.f32 %v1462, %v1607
        %v1635 = vmul.f32 %v1463, %v1607
        %v1636 = vmul.f32 %v1464, %v1607
        %v1637 = vmul.f32 %v1465, %v1607
        %v1638 = vmul.f32 %v1466, %v1607
        %v1639 = vmul.f32 %v1467, %v1607
        %v1640 = vadd.f32 %v1572, %v1608
        %v1641 = vadd.f32 %v1573, %v1609
        %v1642 = vadd.f32 %v1574, %v1610
        %v1643 = vadd.f32 %v1575, %v1611
        %v1644 = vadd.f32 %v1576, %v1612
        %v1645 = vadd.f32 %v1577, %v1613
        %v1646 = vadd.f32 %v1578, %v1614
        %v1647 = vadd.f32 %v1579, %v1615
        %v1648 = vadd.f32 %v1580, %v1616
        %v1649 = vadd.f32 %v1581, %v1617
        %v1650 = vadd.f32 %v1582, %v1618
        %v1651 = vadd.f32 %v1583, %v1619
        %v1652 = vadd.f32 %v1584, %v1620
        %v1653 = vadd.f32 %v1585, %v1621
        %v1654 = vadd.f32 %v1586, %v1622
        %v1655 = vadd.f32 %v1587, %v1623
        %v1656 = vadd.f32 %v1588, %v1624
        %v1657 = vadd.f32 %v1589, %v1625
        %v1658 = vadd.f32 %v1590, %v1626
        %v1659 = vadd.f32 %v1591, %v1627
        %v1660 = vadd.f32 %v1592, %v1628
        %v1661 = vadd.f32 %v1593, %v1629
        %v1662 = vadd.f32 %v1594, %v1630
        %v1663 = vadd.f32 %v1595, %v1631
        %v1664 = vadd.f32 %v1596, %v1632
        %v1665 = vadd.f32 %v1597, %v1633
        %v1666 = vadd.f32 %v1598, %v1634
        %v1667 = vadd.f32 %v1599, %v1635
        %v1668 = vadd.f32 %v1600, %v1636
        %v1669 = vadd.f32 %v1601, %v1637
        %v1670 = vadd.f32 %v1602, %v1638
        %v1671 = vadd.f32 %v1603, %v1639
        %v1672 = vmax.f32 %v1640, 0.0
        %v1673 = vmax.f32 %v1641, 0.0
        %v1674 = vmax.f32 %v1642, 0.0
        %v1675 = vmax.f32 %v1643, 0.0
        %v1676 = vmax.f32 %v1644, 0.0
        %v1677 = vmax.f32 %v1645, 0.0
        %v1678 = vmax.f32 %v1646, 0.0
        %v1679 = vmax.f32 %v1647, 0.0
        %v1680 = vmax.f32 %v1648, 0.0
        %v1681 = vmax.f32 %v1649, 0.0
        %v1682 = vmax.f32 %v1650, 0.0
        %v1683 = vmax.f32 %v1651, 0.0
        %v1684 = vmax.f32 %v1652, 0.0
        %v1685 = vmax.f32 %v1653, 0.0
        %v1686 = vmax.f32 %v1654, 0.0
        %v1687 = vmax.f32 %v1655, 0.0
        %v1688 = vmax.f32 %v1656, 0.0
        %v1689 = vmax.f32 %v1657, 0.0
        %v1690 = vmax.f32 %v1658, 0.0
        %v1691 = vmax.f32 %v1659, 0.0
        %v1692 = vmax.f32 %v1660, 0.0
        %v1693 = vmax.f32 %v1661, 0.0
        %v1694 = vmax.f32 %v1662, 0.0
        %v1695 = vmax.f32 %v1663, 0.0
        %v1696 = vmax.f32 %v1664, 0.0
        %v1697 = vmax.f32 %v1665, 0.0
        %v1698 = vmax.f32 %v1666, 0.0
        %v1699 = vmax.f32 %v1667, 0.0
        %v1700 = vmax.f32 %v1668, 0.0
        %v1701 = vmax.f32 %v1669, 0.0
        %v1702 = vmax.f32 %v1670, 0.0
        %v1703 = vmax.f32 %v1671, 0.0
        %v1704 = vpack.c.bf16 %v1673, %v1672
        %v1705 = vpack.c.bf16 %v1675, %v1674
        %v1706 = vpack.c.bf16 %v1677, %v1676
        %v1707 = vpack.c.bf16 %v1679, %v1678
        %v1708 = vpack.c.bf16 %v1681, %v1680
        %v1709 = vpack.c.bf16 %v1683, %v1682
        %v1710 = vpack.c.bf16 %v1685, %v1684
        %v1711 = vpack.c.bf16 %v1687, %v1686
        %v1712 = vpack.c.bf16 %v1689, %v1688
        %v1713 = vpack.c.bf16 %v1691, %v1690
        %v1714 = vpack.c.bf16 %v1693, %v1692
        %v1715 = vpack.c.bf16 %v1695, %v1694
        %v1716 = vpack.c.bf16 %v1697, %v1696
        %v1717 = vpack.c.bf16 %v1699, %v1698
        %v1718 = vpack.c.bf16 %v1701, %v1700
        %v1719 = vpack.c.bf16 %v1703, %v1702
        %v1720 = vld [vmem:[%s4] sm:$0xf]
        %v1721 = vld [vmem:[%s4 + $0x4] sm:$0xf]
        %v1722 = vld [vmem:[%s4 + $0x8] sm:$0xf]
        %v1723 = vld [vmem:[%s4 + $0xc] sm:$0xf]
        %v1724 = vld [vmem:[%s4 + $0x10] sm:$0xf]
        %v1725 = vld [vmem:[%s4 + $0x14] sm:$0xf]
        %v1726 = vld [vmem:[%s4 + $0x18] sm:$0xf]
        %v1727 = vld [vmem:[%s4 + $0x1c] sm:$0xf]
        %v1728 = vld [vmem:[%s4 + $0x20] sm:$0xf]
        %v1729 = vld [vmem:[%s4 + $0x24] sm:$0xf]
        %v1730 = vld [vmem:[%s4 + $0x28] sm:$0xf]
        %v1731 = vld [vmem:[%s4 + $0x2c] sm:$0xf]
        %v1732 = vld [vmem:[%s4 + $0x30] sm:$0xf]
        %v1733 = vld [vmem:[%s4 + $0x34] sm:$0xf]
        %v1734 = vld [vmem:[%s4 + $0x38] sm:$0xf]
        %v1735 = vld [vmem:[%s4 + $0x3c] sm:$0xf]
        %v1736 = vld [vmem:[%s5] sm:$0x1]
        %v1738 = vlaneseq
        %v1739 = vshrl.u32 %v1738, 7
        %v1740 = vsub.s32 0, %v1739
        %v1741 = vrot.slane %v1736, %v1740
        %v1759 = vunpack.c.l.b16 %v1720
        %v1760 = vunpack.c.l.b16 %v1721
        %v1761 = vunpack.c.l.b16 %v1722
        %v1762 = vunpack.c.l.b16 %v1723
        %v1763 = vunpack.c.l.b16 %v1724
        %v1764 = vunpack.c.l.b16 %v1725
        %v1765 = vunpack.c.l.b16 %v1726
        %v1766 = vunpack.c.l.b16 %v1727
        %v1767 = vunpack.c.l.b16 %v1728
        %v1768 = vunpack.c.l.b16 %v1729
        %v1769 = vunpack.c.l.b16 %v1730
        %v1770 = vunpack.c.l.b16 %v1731
        %v1771 = vunpack.c.l.b16 %v1732
        %v1772 = vunpack.c.l.b16 %v1733
        %v1773 = vunpack.c.l.b16 %v1734
        %v1774 = vunpack.c.l.b16 %v1735
        %v1775 = vpack.c.b16 %v1760, %v1759
        %v1776 = vpack.c.b16 %v1762, %v1761
        %v1777 = vpack.c.b16 %v1764, %v1763
        %v1778 = vpack.c.b16 %v1766, %v1765
        %v1779 = vpack.c.b16 %v1768, %v1767
        %v1780 = vpack.c.b16 %v1770, %v1769
        %v1781 = vpack.c.b16 %v1772, %v1771
        %v1782 = vpack.c.b16 %v1774, %v1773
        %1791 = vmatprep.subr.bf16.mxu0 0
        %1792 = vmatpush1.bf16.msra.mxu0 %v1782
        %1793 = vmatprep.subr.bf16.mxu0 0
        %1794 = vmatpush1.bf16.msra.mxu0 %v1781
        %1795 = vmatprep.subr.bf16.mxu0 0
        %1796 = vmatpush1.bf16.msra.mxu0 %v1780
        %1797 = vmatprep.subr.bf16.mxu0 0
        %1798 = vmatpush1.bf16.msra.mxu0 %v1779
        %1799 = vmatprep.subr.bf16.mxu0 0
        %1800 = vmatpush1.bf16.msra.mxu0 %v1778
        %1801 = vmatprep.subr.bf16.mxu0 0
        %1802 = vmatpush1.bf16.msra.mxu0 %v1777
        %1803 = vmatprep.subr.bf16.mxu0 0
        %1804 = vmatpush1.bf16.msra.mxu0 %v1776
        %1805 = vmatprep.subr.bf16.mxu0 0
        %1806 = vmatpush1.bf16.msra.mxu0 %v1775
        %1807 = vmatprep.subr.bf16.mxu0 0
        %1808 = vmatpush2.bf16.msra.mxu0 0
        %1809 = vmatprep.subr.bf16.mxu0 0
        %1810 = vmatpush2.bf16.msra.mxu0 0
        %1811 = vmatprep.subr.bf16.mxu0 0
        %1812 = vmatpush2.bf16.msra.mxu0 0
        %1813 = vmatprep.subr.bf16.mxu0 0
        %1814 = vmatpush2.bf16.msra.mxu0 0
        %1815 = vmatprep.subr.bf16.mxu0 0
        %1816 = vmatpush2.bf16.msra.mxu0 0
        %1817 = vmatprep.subr.bf16.mxu0 0
        %1818 = vmatpush2.bf16.msra.mxu0 0
        %1819 = vmatprep.subr.bf16.mxu0 0
        %1820 = vmatpush2.bf16.msra.mxu0 0
        %1821 = vmatprep.subr.bf16.mxu0 0
        %1822 = vmatpush2.bf16.msra.mxu0 0
        %1823 = vmatprep.mubr.bf16.mxu0 0
        %1824 = vmatmul.mubr.bf16.gmra.mxu0 %v1704
        %v1825 = vpop.f32.mrf.mxu0
        %v1826 = vadd.f32 %v1741, %v1825
        %v1827 = vpop.f32.mrf.mxu0
        %v1828 = vpop.f32.mrf.mxu0
        %v1829 = vadd.f32 %v1741, %v1828
        %v1830 = vpop.f32.mrf.mxu0
        %1831 = vmatprep.mubr.bf16.mxu0 0
        %1832 = vmatmul.mubr.bf16.gmra.mxu0 %v1705
        %v1833 = vpop.f32.mrf.mxu0
        %v1834 = vadd.f32 %v1741, %v1833
        %v1835 = vpop.f32.mrf.mxu0
        %v1836 = vpop.f32.mrf.mxu0
        %v1837 = vadd.f32 %v1741, %v1836
        %v1838 = vpop.f32.mrf.mxu0
        %1839 = vmatprep.mubr.bf16.mxu0 0
        %1840 = vmatmul.mubr.bf16.gmra.mxu0 %v1706
        %v1841 = vpop.f32.mrf.mxu0
        %v1842 = vadd.f32 %v1741, %v1841
        %v1843 = vpop.f32.mrf.mxu0
        %v1844 = vpop.f32.mrf.mxu0
        %v1845 = vadd.f32 %v1741, %v1844
        %v1846 = vpop.f32.mrf.mxu0
        %1847 = vmatprep.mubr.bf16.mxu0 0
        %1848 = vmatmul.mubr.bf16.gmra.mxu0 %v1707
        %v1849 = vpop.f32.mrf.mxu0
        %v1850 = vadd.f32 %v1741, %v1849
        %v1851 = vpop.f32.mrf.mxu0
        %v1852 = vpop.f32.mrf.mxu0
        %v1853 = vadd.f32 %v1741, %v1852
        %v1854 = vpop.f32.mrf.mxu0
        %1855 = vmatprep.mubr.bf16.mxu0 0
        %1856 = vmatmul.mubr.bf16.gmra.mxu0 %v1708
        %v1857 = vpop.f32.mrf.mxu0
        %v1858 = vadd.f32 %v1741, %v1857
        %v1859 = vpop.f32.mrf.mxu0
        %v1860 = vpop.f32.mrf.mxu0
        %v1861 = vadd.f32 %v1741, %v1860
        %v1862 = vpop.f32.mrf.mxu0
        %1863 = vmatprep.mubr.bf16.mxu0 0
        %1864 = vmatmul.mubr.bf16.gmra.mxu0 %v1709
        %v1865 = vpop.f32.mrf.mxu0
        %v1866 = vadd.f32 %v1741, %v1865
        %v1867 = vpop.f32.mrf.mxu0
        %v1868 = vpop.f32.mrf.mxu0
        %v1869 = vadd.f32 %v1741, %v1868
        %v1870 = vpop.f32.mrf.mxu0
        %1871 = vmatprep.mubr.bf16.mxu0 0
        %1872 = vmatmul.mubr.bf16.gmra.mxu0 %v1710
        %v1873 = vpop.f32.mrf.mxu0
        %v1874 = vadd.f32 %v1741, %v1873
        %v1875 = vpop.f32.mrf.mxu0
        %v1876 = vpop.f32.mrf.mxu0
        %v1877 = vadd.f32 %v1741, %v1876
        %v1878 = vpop.f32.mrf.mxu0
        %1879 = vmatprep.mubr.bf16.mxu0 0
        %1880 = vmatmul.mubr.bf16.gmra.mxu0 %v1711
        %v1881 = vpop.f32.mrf.mxu0
        %v1882 = vadd.f32 %v1741, %v1881
        %v1883 = vpop.f32.mrf.mxu0
        %v1884 = vpop.f32.mrf.mxu0
        %v1885 = vadd.f32 %v1741, %v1884
        %v1886 = vpop.f32.mrf.mxu0
        %1887 = vmatprep.mubr.bf16.mxu0 0
        %1888 = vmatmul.mubr.bf16.gmra.mxu0 %v1712
        %v1889 = vpop.f32.mrf.mxu0
        %v1890 = vadd.f32 %v1741, %v1889
        %v1891 = vpop.f32.mrf.mxu0
        %v1892 = vpop.f32.mrf.mxu0
        %v1893 = vadd.f32 %v1741, %v1892
        %v1894 = vpop.f32.mrf.mxu0
        %1895 = vmatprep.mubr.bf16.mxu0 0
        %1896 = vmatmul.mubr.bf16.gmra.mxu0 %v1713
        %v1897 = vpop.f32.mrf.mxu0
        %v1898 = vadd.f32 %v1741, %v1897
        %v1899 = vpop.f32.mrf.mxu0
        %v1900 = vpop.f32.mrf.mxu0
        %v1901 = vadd.f32 %v1741, %v1900
        %v1902 = vpop.f32.mrf.mxu0
        %1903 = vmatprep.mubr.bf16.mxu0 0
        %1904 = vmatmul.mubr.bf16.gmra.mxu0 %v1714
        %v1905 = vpop.f32.mrf.mxu0
        %v1906 = vadd.f32 %v1741, %v1905
        %v1907 = vpop.f32.mrf.mxu0
        %v1908 = vpop.f32.mrf.mxu0
        %v1909 = vadd.f32 %v1741, %v1908
        %v1910 = vpop.f32.mrf.mxu0
        %1911 = vmatprep.mubr.bf16.mxu0 0
        %1912 = vmatmul.mubr.bf16.gmra.mxu0 %v1715
        %v1913 = vpop.f32.mrf.mxu0
        %v1914 = vadd.f32 %v1741, %v1913
        %v1915 = vpop.f32.mrf.mxu0
        %v1916 = vpop.f32.mrf.mxu0
        %v1917 = vadd.f32 %v1741, %v1916
        %v1918 = vpop.f32.mrf.mxu0
        %1919 = vmatprep.mubr.bf16.mxu0 0
        %1920 = vmatmul.mubr.bf16.gmra.mxu0 %v1716
        %v1921 = vpop.f32.mrf.mxu0
        %v1922 = vadd.f32 %v1741, %v1921
        %v1923 = vpop.f32.mrf.mxu0
        %v1924 = vpop.f32.mrf.mxu0
        %v1925 = vadd.f32 %v1741, %v1924
        %v1926 = vpop.f32.mrf.mxu0
        %1927 = vmatprep.mubr.bf16.mxu0 0
        %1928 = vmatmul.mubr.bf16.gmra.mxu0 %v1717
        %v1929 = vpop.f32.mrf.mxu0
        %v1930 = vadd.f32 %v1741, %v1929
        %v1931 = vpop.f32.mrf.mxu0
        %v1932 = vpop.f32.mrf.mxu0
        %v1933 = vadd.f32 %v1741, %v1932
        %v1934 = vpop.f32.mrf.mxu0
        %1935 = vmatprep.mubr.bf16.mxu0 0
        %1936 = vmatmul.mubr.bf16.gmra.mxu0 %v1718
        %v1937 = vpop.f32.mrf.mxu0
        %v1938 = vadd.f32 %v1741, %v1937
        %v1939 = vpop.f32.mrf.mxu0
        %v1940 = vpop.f32.mrf.mxu0
        %v1941 = vadd.f32 %v1741, %v1940
        %v1942 = vpop.f32.mrf.mxu0
        %1943 = vmatprep.mubr.bf16.mxu0 0
        %1944 = vmatmul.mubr.bf16.gmra.mxu0 %v1719
        %v1945 = vpop.f32.mrf.mxu0
        %v1946 = vadd.f32 %v1741, %v1945
        %v1947 = vpop.f32.mrf.mxu0
        %v1948 = vpop.f32.mrf.mxu0
        %v1949 = vadd.f32 %v1741, %v1948
        %v1950 = vpop.f32.mrf.mxu0
        %1951 = vdwg.mxu0
        %v1952 = vadd.f32 %v1826, 3.0
        %v1953 = vadd.f32 %v1829, 3.0
        %v1954 = vadd.f32 %v1834, 3.0
        %v1955 = vadd.f32 %v1837, 3.0
        %v1956 = vadd.f32 %v1842, 3.0
        %v1957 = vadd.f32 %v1845, 3.0
        %v1958 = vadd.f32 %v1850, 3.0
        %v1959 = vadd.f32 %v1853, 3.0
        %v1960 = vadd.f32 %v1858, 3.0
        %v1961 = vadd.f32 %v1861, 3.0
        %v1962 = vadd.f32 %v1866, 3.0
        %v1963 = vadd.f32 %v1869, 3.0
        %v1964 = vadd.f32 %v1874, 3.0
        %v1965 = vadd.f32 %v1877, 3.0
        %v1966 = vadd.f32 %v1882, 3.0
        %v1967 = vadd.f32 %v1885, 3.0
        %v1968 = vadd.f32 %v1890, 3.0
        %v1969 = vadd.f32 %v1893, 3.0
        %v1970 = vadd.f32 %v1898, 3.0
        %v1971 = vadd.f32 %v1901, 3.0
        %v1972 = vadd.f32 %v1906, 3.0
        %v1973 = vadd.f32 %v1909, 3.0
        %v1974 = vadd.f32 %v1914, 3.0
        %v1975 = vadd.f32 %v1917, 3.0
        %v1976 = vadd.f32 %v1922, 3.0
        %v1977 = vadd.f32 %v1925, 3.0
        %v1978 = vadd.f32 %v1930, 3.0
        %v1979 = vadd.f32 %v1933, 3.0
        %v1980 = vadd.f32 %v1938, 3.0
        %v1981 = vadd.f32 %v1941, 3.0
        %v1982 = vadd.f32 %v1946, 3.0
        %v1983 = vadd.f32 %v1949, 3.0
        %v1984 = vmax.f32 %v1952, 0.0
        %v1985 = vmax.f32 %v1953, 0.0
        %v1986 = vmax.f32 %v1954, 0.0
        %v1987 = vmax.f32 %v1955, 0.0
        %v1988 = vmax.f32 %v1956, 0.0
        %v1989 = vmax.f32 %v1957, 0.0
        %v1990 = vmax.f32 %v1958, 0.0
        %v1991 = vmax.f32 %v1959, 0.0
        %v1992 = vmax.f32 %v1960, 0.0
        %v1993 = vmax.f32 %v1961, 0.0
        %v1994 = vmax.f32 %v1962, 0.0
        %v1995 = vmax.f32 %v1963, 0.0
        %v1996 = vmax.f32 %v1964, 0.0
        %v1997 = vmax.f32 %v1965, 0.0
        %v1998 = vmax.f32 %v1966, 0.0
        %v1999 = vmax.f32 %v1967, 0.0
        %v2000 = vmax.f32 %v1968, 0.0
        %v2001 = vmax.f32 %v1969, 0.0
        %v2002 = vmax.f32 %v1970, 0.0
        %v2003 = vmax.f32 %v1971, 0.0
        %v2004 = vmax.f32 %v1972, 0.0
        %v2005 = vmax.f32 %v1973, 0.0
        %v2006 = vmax.f32 %v1974, 0.0
        %v2007 = vmax.f32 %v1975, 0.0
        %v2008 = vmax.f32 %v1976, 0.0
        %v2009 = vmax.f32 %v1977, 0.0
        %v2010 = vmax.f32 %v1978, 0.0
        %v2011 = vmax.f32 %v1979, 0.0
        %v2012 = vmax.f32 %v1980, 0.0
        %v2013 = vmax.f32 %v1981, 0.0
        %v2014 = vmax.f32 %v1982, 0.0
        %v2015 = vmax.f32 %v1983, 0.0
        %v2016 = vmin.f32 %v1984, 6.0
        %v2017 = vmin.f32 %v1985, 6.0
        %v2018 = vmin.f32 %v1986, 6.0
        %v2019 = vmin.f32 %v1987, 6.0
        %v2020 = vmin.f32 %v1988, 6.0
        %v2021 = vmin.f32 %v1989, 6.0
        %v2022 = vmin.f32 %v1990, 6.0
        %v2023 = vmin.f32 %v1991, 6.0
        %v2024 = vmin.f32 %v1992, 6.0
        %v2025 = vmin.f32 %v1993, 6.0
        %v2026 = vmin.f32 %v1994, 6.0
        %v2027 = vmin.f32 %v1995, 6.0
        %v2028 = vmin.f32 %v1996, 6.0
        %v2029 = vmin.f32 %v1997, 6.0
        %v2030 = vmin.f32 %v1998, 6.0
        %v2031 = vmin.f32 %v1999, 6.0
        %v2032 = vmin.f32 %v2000, 6.0
        %v2033 = vmin.f32 %v2001, 6.0
        %v2034 = vmin.f32 %v2002, 6.0
        %v2035 = vmin.f32 %v2003, 6.0
        %v2036 = vmin.f32 %v2004, 6.0
        %v2037 = vmin.f32 %v2005, 6.0
        %v2038 = vmin.f32 %v2006, 6.0
        %v2039 = vmin.f32 %v2007, 6.0
        %v2040 = vmin.f32 %v2008, 6.0
        %v2041 = vmin.f32 %v2009, 6.0
        %v2042 = vmin.f32 %v2010, 6.0
        %v2043 = vmin.f32 %v2011, 6.0
        %v2044 = vmin.f32 %v2012, 6.0
        %v2045 = vmin.f32 %v2013, 6.0
        %v2046 = vmin.f32 %v2014, 6.0
        %v2047 = vmin.f32 %v2015, 6.0
        %v2048 = vmul.f32 %v1826, %v2016
        %v2049 = vmul.f32 %v1829, %v2017
        %v2050 = vmul.f32 %v1834, %v2018
        %v2051 = vmul.f32 %v1837, %v2019
        %v2052 = vmul.f32 %v1842, %v2020
        %v2053 = vmul.f32 %v1845, %v2021
        %v2054 = vmul.f32 %v1850, %v2022
        %v2055 = vmul.f32 %v1853, %v2023
        %v2056 = vmul.f32 %v1858, %v2024
        %v2057 = vmul.f32 %v1861, %v2025
        %v2058 = vmul.f32 %v1866, %v2026
        %v2059 = vmul.f32 %v1869, %v2027
        %v2060 = vmul.f32 %v1874, %v2028
        %v2061 = vmul.f32 %v1877, %v2029
        %v2062 = vmul.f32 %v1882, %v2030
        %v2063 = vmul.f32 %v1885, %v2031
        %v2064 = vmul.f32 %v1890, %v2032
        %v2065 = vmul.f32 %v1893, %v2033
        %v2066 = vmul.f32 %v1898, %v2034
        %v2067 = vmul.f32 %v1901, %v2035
        %v2068 = vmul.f32 %v1906, %v2036
        %v2069 = vmul.f32 %v1909, %v2037
        %v2070 = vmul.f32 %v1914, %v2038
        %v2071 = vmul.f32 %v1917, %v2039
        %v2072 = vmul.f32 %v1922, %v2040
        %v2073 = vmul.f32 %v1925, %v2041
        %v2074 = vmul.f32 %v1930, %v2042
        %v2075 = vmul.f32 %v1933, %v2043
        %v2076 = vmul.f32 %v1938, %v2044
        %v2077 = vmul.f32 %v1941, %v2045
        %v2078 = vmul.f32 %v1946, %v2046
        %v2079 = vmul.f32 %v1949, %v2047
        %v2080 = vmul.f32 %v2048, 0.16666667
        %v2081 = vmul.f32 %v2049, 0.16666667
        %v2082 = vmul.f32 %v2050, 0.16666667
        %v2083 = vmul.f32 %v2051, 0.16666667
        %v2084 = vmul.f32 %v2052, 0.16666667
        %v2085 = vmul.f32 %v2053, 0.16666667
        %v2086 = vmul.f32 %v2054, 0.16666667
        %v2087 = vmul.f32 %v2055, 0.16666667
        %v2088 = vmul.f32 %v2056, 0.16666667
        %v2089 = vmul.f32 %v2057, 0.16666667
        %v2090 = vmul.f32 %v2058, 0.16666667
        %v2091 = vmul.f32 %v2059, 0.16666667
        %v2092 = vmul.f32 %v2060, 0.16666667
        %v2093 = vmul.f32 %v2061, 0.16666667
        %v2094 = vmul.f32 %v2062, 0.16666667
        %v2095 = vmul.f32 %v2063, 0.16666667
        %v2096 = vmul.f32 %v2064, 0.16666667
        %v2097 = vmul.f32 %v2065, 0.16666667
        %v2098 = vmul.f32 %v2066, 0.16666667
        %v2099 = vmul.f32 %v2067, 0.16666667
        %v2100 = vmul.f32 %v2068, 0.16666667
        %v2101 = vmul.f32 %v2069, 0.16666667
        %v2102 = vmul.f32 %v2070, 0.16666667
        %v2103 = vmul.f32 %v2071, 0.16666667
        %v2104 = vmul.f32 %v2072, 0.16666667
        %v2105 = vmul.f32 %v2073, 0.16666667
        %v2106 = vmul.f32 %v2074, 0.16666667
        %v2107 = vmul.f32 %v2075, 0.16666667
        %v2108 = vmul.f32 %v2076, 0.16666667
        %v2109 = vmul.f32 %v2077, 0.16666667
        %v2110 = vmul.f32 %v2078, 0.16666667
        %v2111 = vmul.f32 %v2079, 0.16666667
        %v2112 = vadd.f32 %v2080, %v2081
        %v2113 = vadd.f32 %v2112, %v2082
        %v2114 = vadd.f32 %v2113, %v2083
        %v2115 = vadd.f32 %v2114, %v2084
        %v2116 = vadd.f32 %v2115, %v2085
        %v2117 = vadd.f32 %v2116, %v2086
        %v2118 = vadd.f32 %v2117, %v2087
        %v2119 = vadd.f32 %v2118, %v2088
        %v2120 = vadd.f32 %v2119, %v2089
        %v2121 = vadd.f32 %v2120, %v2090
        %v2122 = vadd.f32 %v2121, %v2091
        %v2123 = vadd.f32 %v2122, %v2092
        %v2124 = vadd.f32 %v2123, %v2093
        %v2125 = vadd.f32 %v2124, %v2094
        %v2126 = vadd.f32 %v2125, %v2095
        %v2127 = vadd.f32 %v2126, %v2096
        %v2128 = vadd.f32 %v2127, %v2097
        %v2129 = vadd.f32 %v2128, %v2098
        %v2130 = vadd.f32 %v2129, %v2099
        %v2131 = vadd.f32 %v2130, %v2100
        %v2132 = vadd.f32 %v2131, %v2101
        %v2133 = vadd.f32 %v2132, %v2102
        %v2134 = vadd.f32 %v2133, %v2103
        %v2135 = vadd.f32 %v2134, %v2104
        %v2136 = vadd.f32 %v2135, %v2105
        %v2137 = vadd.f32 %v2136, %v2106
        %v2138 = vadd.f32 %v2137, %v2107
        %v2139 = vadd.f32 %v2138, %v2108
        %v2140 = vadd.f32 %v2139, %v2109
        %v2141 = vadd.f32 %v2140, %v2110
        %v2142 = vadd.f32 %v2141, %v2111
        %v2143 = vrot.slane %v2142, 4
        %v2144 = vadd.f32 %v2142, %v2143
        %v2145 = vrot.slane %v2144, 2
        %v2146 = vadd.f32 %v2144, %v2145
        %v2147 = vrot.slane %v2146, 1
        %v2148 = vadd.f32 %v2146, %v2147
        %v2149 = vrcp.pop 256.0
        %v2150 = vmul.f32 %v2148, %v2149
        %v2151 = vpack.c.bf16 %v2150, %v2150
        %v2152 = vld [vmem:[%s6] sm:$0xf]
        %v2153 = vld [vmem:[%s6 + $0x4] sm:$0xf]
        %v2154 = vld [vmem:[%s6 + $0x8] sm:$0xf]
        %v2155 = vld [vmem:[%s6 + $0xc] sm:$0xf]
        %v2156 = vld [vmem:[%s6 + $0x10] sm:$0xf]
        %v2157 = vld [vmem:[%s6 + $0x14] sm:$0xf]
        %v2158 = vld [vmem:[%s6 + $0x18] sm:$0xf]
        %v2159 = vld [vmem:[%s6 + $0x1c] sm:$0xf]
        %v2160 = vld [vmem:[%s6 + $0x20] sm:$0xf]
        %v2161 = vld [vmem:[%s6 + $0x24] sm:$0xf]
        %v2162 = vld [vmem:[%s6 + $0x28] sm:$0xf]
        %v2163 = vld [vmem:[%s6 + $0x2c] sm:$0xf]
        %v2164 = vld [vmem:[%s6 + $0x30] sm:$0xf]
        %v2165 = vld [vmem:[%s6 + $0x34] sm:$0xf]
        %v2166 = vld [vmem:[%s6 + $0x38] sm:$0xf]
        %v2167 = vld [vmem:[%s6 + $0x3c] sm:$0xf]
        %v2168 = vld [vmem:[%s7] sm:$0x1]
        %v2185 = vunpack.c.l.b16 %v2152
        %v2186 = vunpack.c.l.b16 %v2153
        %v2187 = vunpack.c.l.b16 %v2154
        %v2188 = vunpack.c.l.b16 %v2155
        %v2189 = vunpack.c.l.b16 %v2156
        %v2190 = vunpack.c.l.b16 %v2157
        %v2191 = vunpack.c.l.b16 %v2158
        %v2192 = vunpack.c.l.b16 %v2159
        %v2193 = vunpack.c.l.b16 %v2160
        %v2194 = vunpack.c.l.b16 %v2161
        %v2195 = vunpack.c.l.b16 %v2162
        %v2196 = vunpack.c.l.b16 %v2163
        %v2197 = vunpack.c.l.b16 %v2164
        %v2198 = vunpack.c.l.b16 %v2165
        %v2199 = vunpack.c.l.b16 %v2166
        %v2200 = vunpack.c.l.b16 %v2167
        %v2201 = vpack.c.b16 %v2186, %v2185
        %v2202 = vpack.c.b16 %v2188, %v2187
        %v2203 = vpack.c.b16 %v2190, %v2189
        %v2204 = vpack.c.b16 %v2192, %v2191
        %v2205 = vpack.c.b16 %v2194, %v2193
        %v2206 = vpack.c.b16 %v2196, %v2195
        %v2207 = vpack.c.b16 %v2198, %v2197
        %v2208 = vpack.c.b16 %v2200, %v2199
        %2217 = vmatprep.subr.bf16.mxu0 0
        %2218 = vmatpush1.bf16.msra.mxu0 %v2208
        %2219 = vmatprep.subr.bf16.mxu0 0
        %2220 = vmatpush1.bf16.msra.mxu0 %v2207
        %2221 = vmatprep.subr.bf16.mxu0 0
        %2222 = vmatpush1.bf16.msra.mxu0 %v2206
        %2223 = vmatprep.subr.bf16.mxu0 0
        %2224 = vmatpush1.bf16.msra.mxu0 %v2205
        %2225 = vmatprep.subr.bf16.mxu0 0
        %2226 = vmatpush1.bf16.msra.mxu0 %v2204
        %2227 = vmatprep.subr.bf16.mxu0 0
        %2228 = vmatpush1.bf16.msra.mxu0 %v2203
        %2229 = vmatprep.subr.bf16.mxu0 0
        %2230 = vmatpush1.bf16.msra.mxu0 %v2202
        %2231 = vmatprep.subr.bf16.mxu0 0
        %2232 = vmatpush1.bf16.msra.mxu0 %v2201
        %2233 = vmatprep.subr.bf16.mxu0 0
        %2234 = vmatpush2.bf16.msra.mxu0 0
        %2235 = vmatprep.subr.bf16.mxu0 0
        %2236 = vmatpush2.bf16.msra.mxu0 0
        %2237 = vmatprep.subr.bf16.mxu0 0
        %2238 = vmatpush2.bf16.msra.mxu0 0
        %2239 = vmatprep.subr.bf16.mxu0 0
        %2240 = vmatpush2.bf16.msra.mxu0 0
        %2241 = vmatprep.subr.bf16.mxu0 0
        %2242 = vmatpush2.bf16.msra.mxu0 0
        %2243 = vmatprep.subr.bf16.mxu0 0
        %2244 = vmatpush2.bf16.msra.mxu0 0
        %2245 = vmatprep.subr.bf16.mxu0 0
        %2246 = vmatpush2.bf16.msra.mxu0 0
        %2247 = vmatprep.subr.bf16.mxu0 0
        %2248 = vmatpush2.bf16.msra.mxu0 0
        %2249 = vmatprep.mubr.bf16.mxu0 0
        %2250 = vmatmul.mubr.bf16.gmra.mxu0 %v2151
        %v2251 = vpop.f32.mrf.mxu0
        %v2252 = vadd.f32 %v2168, %v2251
        %v2253 = vpop.f32.mrf.mxu0
        %v2254 = vpop.f32.mrf.mxu0
        %v2255 = vpop.f32.mrf.mxu0
        %2256 = vdwg.mxu0
        %v2257 = vadd.f32 %v2252, 3.0
        %v2258 = vmax.f32 %v2257, 0.0
        %v2259 = vmin.f32 %v2258, 6.0
        %v2260 = vmul.f32 %v2252, %v2259
        %v2261 = vmul.f32 %v2260, 0.16666667
        %v2262 = vpack.c.bf16 %v2261, %v2261
        %v2263 = vld [vmem:[%s8] sm:$0xf]
        %v2264 = vld [vmem:[%s8 + $0x4] sm:$0xf]
        %v2265 = vld [vmem:[%s8 + $0x8] sm:$0xf]
        %v2266 = vld [vmem:[%s8 + $0xc] sm:$0xf]
        %v2267 = vld [vmem:[%s8 + $0x10] sm:$0xf]
        %v2268 = vld [vmem:[%s8 + $0x14] sm:$0xf]
        %v2269 = vld [vmem:[%s8 + $0x18] sm:$0xf]
        %v2270 = vld [vmem:[%s8 + $0x1c] sm:$0xf]
        %v2271 = vld [vmem:[%s8 + $0x20] sm:$0xf]
        %v2272 = vld [vmem:[%s8 + $0x24] sm:$0xf]
        %v2273 = vld [vmem:[%s8 + $0x28] sm:$0xf]
        %v2274 = vld [vmem:[%s8 + $0x2c] sm:$0xf]
        %v2275 = vld [vmem:[%s8 + $0x30] sm:$0xf]
        %v2276 = vld [vmem:[%s8 + $0x34] sm:$0xf]
        %v2277 = vld [vmem:[%s8 + $0x38] sm:$0xf]
        %v2278 = vld [vmem:[%s8 + $0x3c] sm:$0xf]
        %v2279 = vld [vmem:[%s9] sm:$0x1]
        %v2296 = vunpack.c.l.b16 %v2263
        %v2297 = vunpack.c.l.b16 %v2264
        %v2298 = vunpack.c.l.b16 %v2265
        %v2299 = vunpack.c.l.b16 %v2266
        %v2300 = vunpack.c.l.b16 %v2267
        %v2301 = vunpack.c.l.b16 %v2268
        %v2302 = vunpack.c.l.b16 %v2269
        %v2303 = vunpack.c.l.b16 %v2270
        %v2304 = vunpack.c.l.b16 %v2271
        %v2305 = vunpack.c.l.b16 %v2272
        %v2306 = vunpack.c.l.b16 %v2273
        %v2307 = vunpack.c.l.b16 %v2274
        %v2308 = vunpack.c.l.b16 %v2275
        %v2309 = vunpack.c.l.b16 %v2276
        %v2310 = vunpack.c.l.b16 %v2277
        %v2311 = vunpack.c.l.b16 %v2278
        %v2312 = vpack.c.b16 %v2297, %v2296
        %v2313 = vpack.c.b16 %v2299, %v2298
        %v2314 = vpack.c.b16 %v2301, %v2300
        %v2315 = vpack.c.b16 %v2303, %v2302
        %v2316 = vpack.c.b16 %v2305, %v2304
        %v2317 = vpack.c.b16 %v2307, %v2306
        %v2318 = vpack.c.b16 %v2309, %v2308
        %v2319 = vpack.c.b16 %v2311, %v2310
        %2328 = vmatprep.subr.bf16.mxu0 0
        %2329 = vmatpush1.bf16.msra.mxu0 %v2319
        %2330 = vmatprep.subr.bf16.mxu0 0
        %2331 = vmatpush1.bf16.msra.mxu0 %v2318
        %2332 = vmatprep.subr.bf16.mxu0 0
        %2333 = vmatpush1.bf16.msra.mxu0 %v2317
        %2334 = vmatprep.subr.bf16.mxu0 0
        %2335 = vmatpush1.bf16.msra.mxu0 %v2316
        %2336 = vmatprep.subr.bf16.mxu0 0
        %2337 = vmatpush1.bf16.msra.mxu0 %v2315
        %2338 = vmatprep.subr.bf16.mxu0 0
        %2339 = vmatpush1.bf16.msra.mxu0 %v2314
        %2340 = vmatprep.subr.bf16.mxu0 0
        %2341 = vmatpush1.bf16.msra.mxu0 %v2313
        %2342 = vmatprep.subr.bf16.mxu0 0
        %2343 = vmatpush1.bf16.msra.mxu0 %v2312
        %2344 = vmatprep.subr.bf16.mxu0 0
        %2345 = vmatpush2.bf16.msra.mxu0 0
        %2346 = vmatprep.subr.bf16.mxu0 0
        %2347 = vmatpush2.bf16.msra.mxu0 0
        %2348 = vmatprep.subr.bf16.mxu0 0
        %2349 = vmatpush2.bf16.msra.mxu0 0
        %2350 = vmatprep.subr.bf16.mxu0 0
        %2351 = vmatpush2.bf16.msra.mxu0 0
        %2352 = vmatprep.subr.bf16.mxu0 0
        %2353 = vmatpush2.bf16.msra.mxu0 0
        %2354 = vmatprep.subr.bf16.mxu0 0
        %2355 = vmatpush2.bf16.msra.mxu0 0
        %2356 = vmatprep.subr.bf16.mxu0 0
        %2357 = vmatpush2.bf16.msra.mxu0 0
        %2358 = vmatprep.subr.bf16.mxu0 0
        %2359 = vmatpush2.bf16.msra.mxu0 0
        %2360 = vmatprep.mubr.bf16.mxu0 0
        %2361 = vmatmul.mubr.bf16.gmra.mxu0 %v2262
        %v2362 = vpop.f32.mrf.mxu0
        %v2363 = vadd.f32 %v2279, %v2362
        %v2364 = vpop.f32.mrf.mxu0
        %v2365 = vpop.f32.mrf.mxu0
        %v2366 = vpop.f32.mrf.mxu0
        %2367 = vdwg.mxu0
        %2368 = vst [vmem:[%s351] sm:$0x1] %v2363
        %s2369 = sand.u32 %s247, 1
        %s2370 = scalar_lea.sflag [#allocation4], %s2369
        %s2371 = sand.u32 %s247, 1
        %s2372 = scalar_lea.vmem [#allocation3], %s2371
        // Predicated region
        $region61: #{reidnet_forward.1} parent=59 // pred_check
          %p2373 = pneg %p257
        $region62: #{reidnet_forward.1} parent=59 // pred_check_branch
          %2375 = sbr.rel (%p2373) target = $region64
        $region63: #{reidnet_forward.1} parent=59 // pred_region
          %s2377 = ssub.s32 16, 16
          %2378 = vsyncadd %s2370, %s2377
          %s2379 = smul.addr %s24, 16
          %s2380 = scalar_lea.hbm %s10, %s2379
          %s2382 = sshll.u32 %s2372, 4
          %s2383 = int_to_ptr.vmem [resolvable:$true] %s2382
          %2385 = dma.vmem_to_hbm [thread:$0]  %s2383, 16, %s2380, %s2370
        $region64: #{reidnet_forward.1} parent=59 // pred_fallthru
          _
      $region60: #{reidnet_forward.1} parent=5 // pred_fallthru
        _
      %p2386 = scmp.le.s32.totalorder 2, %s19
      // Predicated region
      $region65: #{reidnet_forward.1} parent=5 // pred_check
        %p2387 = pneg %p2386
      $region66: #{reidnet_forward.1} parent=5 // pred_check_branch
        %2389 = sbr.rel (%p2387) target = $region68
      $region67: #{reidnet_forward.1} parent=5 // pred_region
        %s2390 = ssub.s32 %s19, 2
        // Predicated region
        $region69: #{reidnet_forward.1} parent=67 // pred_check
          %p2391 = pneg %p263
        $region70: #{reidnet_forward.1} parent=67 // pred_check_branch
          %2393 = sbr.rel (%p2391) target = $region72
        $region71: #{reidnet_forward.1} parent=67 // pred_region
          %s2394 = sand.u32 %s248, 1
          %s2395 = scalar_lea.sflag [#allocation4], %s2394
          %s2396 = sand.u32 %s248, 1
          %s2397 = scalar_lea.vmem [#allocation3], %s2396
          %2398 = dma.done %s2395, 16
        $region72: #{reidnet_forward.1} parent=67 // pred_fallthru
          _
      $region68: #{reidnet_forward.1} parent=5 // pred_fallthru
        _
    $region6: #{reidnet_forward.1} parent=1 // loop_footer
      %s23 = sadd.s32 1, %s19
    $region7: #{reidnet_forward.1} parent=1 // loop_footer_branch
      %18 = sbr.rel target = $region3
    $region8: #{reidnet_forward.1} parent=1 // loop_exit
      _
    %2399 = vsyncpa [#allocation4], 1
    %s2400 = scalar_lea.sflag [#allocation4], 1
    %2401 = vsyncpa %s2400, 1

</llo_original>
